<compile_context>
chip_gen: v6e
topology: v6e:2x2x1
jax: 0.10.0
libtpu: 0.0.40
codegen_flags: <defaults>
</compile_context>

<pallas_src>
import functools

import jax
import jax.numpy as jnp
from jax import lax
from jax.experimental import pallas as pl
from jax.experimental.pallas import tpu as pltpu


def _round_up(v, m):
    return (v + m - 1) // m * m


def _invariant_spec(shape):
    """Grid-invariant input: constant index_map + single buffer (no refetch)."""
    index_map = lambda p, i: (0,) * len(shape)
    try:
        return pl.BlockSpec(shape, index_map, pipeline_mode=pl.Buffered(1))
    except (TypeError, AttributeError):   # older jax: fall back to default buffering
        return pl.BlockSpec(shape, index_map)


def _tpu_config():
    """Per-generation preferred row-block size and physical VMEM capacity."""
    try:
        kind = jax.devices()[0].device_kind.lower()
    except Exception:
        kind = ""
    try:
        vmem_cap = int(pltpu.get_tpu_info().vmem_capacity_bytes)
    except Exception:
        vmem_cap = 64 * 1024 * 1024       # conservative (v7x-sized) default
    if "v5" in kind:
        tn_pref = 128                     # 4x128^2 MXU: 128 is native; spend VMEM on residency
    elif "v6" in kind:
        tn_pref = 512                     # 2x256^2 MXU + 128 MiB VMEM
    else:
        tn_pref = 256                     # v7x (64 MiB VMEM) and unknown chips
    return tn_pref, vmem_cap


def _vmem_bytes(n_pad, f_pad, d_pad, t_pad, b_pad, tn, adj_resident, hoist):
    """Conservative VMEM estimate used to pick tn / adjacency residency."""
    b = (f_pad * d_pad + d_pad * d_pad + d_pad * t_pad) * 2        # weights (bf16, 1 buf)
    b += 8 * (2 * d_pad + t_pad) * 4                               # biases (sublane padded)
    b += n_pad * d_pad * 2                                         # h1 scratch (bf16)
    b += b_pad * d_pad * 4                                         # pooled accumulator
    b += 2 * b_pad * t_pad * 4                                     # output block
    b += b_pad * 128 * 4                                           # 1/count tile
    b += 2 * 8 * tn * 4                                            # batch-id row blocks
    if hoist:
        b += n_pad * d_pad * 2                                     # xW1 scratch
        b += 2 * tn * f_pad * 2                                    # streamed x (2 bufs)
    else:
        b += n_pad * f_pad * 2                                     # resident x (1 buf)
    b += (n_pad * n_pad) if adj_resident else (2 * tn * n_pad)     # int8 (A+I)
    b += tn * n_pad * 6                                            # i8->f32->bf16 slab temps
    b += 3 * tn * d_pad * 4                                        # f32 matmul accum temps
    return b


def _make_kernel(tn, b_pad, hoist_xw1, adj_resident):
    """Kernel over grid = (phase, node row block).

    Phases (hoist_xw1=False): 0 = layer-1 GIN, 1 = layer-2 + mean-pool + head.
    Phases (hoist_xw1=True):  0 = xW1 fill, 1 = layer-1, 2 = layer-2 + head.
    """
    p_l1 = 1 if hoist_xw1 else 0
    p_l2 = p_l1 + 1

    def kernel(x_ref, adj_ref, batch_ref, invc_ref,
               w1_ref, b1_ref, w2_ref, b2_ref, wp_ref, bp_ref,
               out_ref, h1_ref, pooled_ref, *maybe_xw1):
        phase = pl.program_id(0)
        blk = pl.program_id(1)
        nb = pl.num_programs(1)
        row0 = pl.multiple_of(blk * tn, tn)

        def adj_block():
            a8 = adj_ref[pl.ds(row0, tn), :] if adj_resident else adj_ref[...]
            # int8 -> f32 -> bf16; exact for the 0/1/small-count adjacency,
            # free VPU work on this HBM-bound path.
            return a8.astype(jnp.float32).astype(jnp.bfloat16)

        # One-time init at the very first grid step (cheap insurance for out).
        @pl.when(jnp.logical_and(phase == 0, blk == 0))
        def _():
            pooled_ref[...] = jnp.zeros_like(pooled_ref)
            out_ref[...] = jnp.zeros_like(out_ref)

        if hoist_xw1:
            xw1_ref = maybe_xw1[0]

            # ---- phase 0: fill xW1 scratch from streamed x row blocks ----
            @pl.when(phase == 0)
            def _():
                xw1 = jnp.dot(x_ref[...], w1_ref[...],
                              preferred_element_type=jnp.float32)
                xw1_ref[pl.ds(row0, tn), :] = xw1.astype(jnp.bfloat16)

            # ---- layer 1: h1 = ReLU((A+I) @ xW1 + b1) ----
            @pl.when(phase == p_l1)
            def _():
                h1 = jnp.dot(adj_block(), xw1_ref[...],
                             preferred_element_type=jnp.float32)
                h1 = jnp.maximum(h1 + b1_ref[...], 0.0)
                h1_ref[pl.ds(row0, tn), :] = h1.astype(jnp.bfloat16)
        else:
            # ---- layer 1: h1 = ReLU(((A+I) @ x) @ W1 + b1) ----
            @pl.when(phase == p_l1)
            def _():
                agg1 = jnp.dot(adj_block(), x_ref[...],
                               preferred_element_type=jnp.float32)
                h1 = jnp.dot(agg1.astype(jnp.bfloat16), w1_ref[...],
                             preferred_element_type=jnp.float32)
                h1 = jnp.maximum(h1 + b1_ref[...], 0.0)
                h1_ref[pl.ds(row0, tn), :] = h1.astype(jnp.bfloat16)

        # ---- final phase: layer 2 + mean-pool accumulation + prediction ----
        @pl.when(phase == p_l2)
        def _():
            agg2 = jnp.dot(adj_block(), h1_ref[...],
                           preferred_element_type=jnp.float32)           # [tn, D]
            h2 = jnp.dot(agg2.astype(jnp.bfloat16), w2_ref[...],
                         preferred_element_type=jnp.float32) + b2_ref[...]

            # Graph one-hot: graphs on sublanes, nodes on lanes ([b_pad, tn]).
            gids = lax.broadcasted_iota(jnp.int32, (b_pad, tn), 0)
            onehot = (gids == batch_ref[...]).astype(jnp.float32)
            pooled_ref[...] += jnp.dot(onehot, h2,                        # f32 pooling
                                       preferred_element_type=jnp.float32)

            @pl.when(blk == nb - 1)
            def _():
                pooled = pooled_ref[...] * invc_ref[...]                  # mean pool
                pred = jnp.dot(pooled.astype(jnp.bfloat16), wp_ref[...],
                               preferred_element_type=jnp.float32)
                out_ref[...] = pred + bp_ref[...]

    return kernel


def gnn_graphpred_forward(x, edge_index, edge_attr, batch, params, num_graphs,
                          block_rows=None):
    """Builds padded operands (glue) and calls the fused Pallas kernel.

    block_rows, if given, must be a multiple of 128 and overrides the
    per-generation tile choice.
    """
    del edge_attr  # TODO(synk): see header — edge_attr embedding undefined here.
    n, f = x.shape
    d = params["w1"].shape[1]
    t = params["wp"].shape[1]

    f_pad = _round_up(f, 128)
    d_pad = _round_up(d, 128)
    t_pad = _round_up(t, 128)
    b_pad = _round_up(num_graphs, 8)          # graphs live on the sublane axis
    hoist_xw1 = f_pad > d_pad                 # adaptive layer-1 matmul ordering

    # ---- per-generation tile size / adjacency residency / VMEM budget ----
    tn_pref, vmem_cap = _tpu_config()
    if block_rows is not None:
        tn_candidates = [int(block_rows)]
    else:
        tn_candidates = [c for c in (512, 256, 128) if c <= tn_pref] or [128]
    budget = int(0.70 * vmem_cap)             # headroom for Mosaic internal scratch
    chosen = None
    for adj_resident in (True, False):        # residency >> tile size (HBM-bound)
        for tn in tn_candidates:
            tn_c = min(tn, _round_up(n, 128))
            n_pad_c = _round_up(max(n, 1), tn_c)
            if _vmem_bytes(n_pad_c, f_pad, d_pad, t_pad, b_pad, tn_c,
                           adj_resident, hoist_xw1) <= budget:
                chosen = (adj_resident, tn_c, n_pad_c)
                break
        if chosen is not None:
            break
    if chosen is None:                        # nothing fits cleanly: smallest streamed config
        tn_c = min(128, _round_up(n, 128))
        chosen = (False, tn_c, _round_up(max(n, 1), tn_c))
    adj_resident, tn, n_pad = chosen

    est = _vmem_bytes(n_pad, f_pad, d_pad, t_pad, b_pad, tn, adj_resident, hoist_xw1)
    vmem_limit = max(est + (16 << 20), 32 << 20)
    vmem_limit = min(vmem_limit, int(0.85 * vmem_cap))
    vmem_limit = int(max(vmem_limit, min(est, vmem_cap)))

    # ---- dense (A+I) built directly in int8 (exact for small multiplicities) ----
    src = edge_index[0].astype(jnp.int32)
    dst = edge_index[1].astype(jnp.int32)
    loop = jnp.arange(n, dtype=jnp.int32)
    rows = jnp.concatenate([dst, loop])
    cols = jnp.concatenate([src, loop])
    adj = jnp.zeros((n_pad, n_pad), jnp.int8).at[rows, cols].add(jnp.int8(1))

    # Node features (bf16) and lane-dense batch-id row (-1 marks padded nodes).
    x_p = jnp.zeros((n_pad, f_pad), jnp.bfloat16).at[:n, :f].set(x.astype(jnp.bfloat16))
    batch_i32 = batch.astype(jnp.int32)
    batch_p = jnp.full((1, n_pad), -1, jnp.int32).at[0, :n].set(batch_i32)

    # 1/|graph| for the mean pool (no in-kernel reciprocal).
    counts = jax.ops.segment_sum(jnp.ones((n,), jnp.float32), batch_i32,
                                 num_segments=num_graphs)
    inv_counts = jnp.where(counts > 0.0, 1.0 / jnp.maximum(counts, 1.0), 0.0)
    invc_p = jnp.zeros((b_pad, 1), jnp.float32).at[:num_graphs, 0].set(inv_counts)

    def pad2(a, r, c, dt):
        return jnp.zeros((r, c), dt).at[:a.shape[0], :a.shape[1]].set(a.astype(dt))

    w1_p = pad2(params["w1"], f_pad, d_pad, jnp.bfloat16)
    b1_p = pad2(params["b1"], 1, d_pad, jnp.float32)
    w2_p = pad2(params["w2"], d_pad, d_pad, jnp.bfloat16)
    b2_p = pad2(params["b2"], 1, d_pad, jnp.float32)
    wp_p = pad2(params["wp"], d_pad, t_pad, jnp.bfloat16)
    bp_p = pad2(params["bp"], 1, t_pad, jnp.float32)

    nb = n_pad // tn
    num_phases = 3 if hoist_xw1 else 2
    grid = (num_phases, nb)

    # ---- BlockSpecs ----
    if hoist_xw1:
        # x only consumed in phase 0: stream row blocks there, pin block 0 after.
        x_spec = pl.BlockSpec((tn, f_pad), lambda p, i: (jnp.where(p == 0, i, 0), 0))
    else:
        x_spec = _invariant_spec((n_pad, f_pad))

    if adj_resident:
        adj_spec = _invariant_spec((n_pad, n_pad))          # fetched from HBM once
    elif hoist_xw1:
        # (A+I) not needed in the xW1 phase: keep block 0 pinned there.
        adj_spec = pl.BlockSpec((tn, n_pad), lambda p, i: (jnp.where(p == 0, 0, i), 0))
    else:
        adj_spec = pl.BlockSpec((tn, n_pad), lambda p, i: (i, 0))

    in_specs = [
        x_spec,                                              # node features
        adj_spec,                                            # int8 (A+I)
        pl.BlockSpec((1, tn), lambda p, i: (0, i)),          # batch ids (lane-dense row)
        _invariant_spec((b_pad, 1)),                         # 1/count per graph
        _invariant_spec((f_pad, d_pad)),                     # W1
        _invariant_spec((1, d_pad)),                         # b1
        _invariant_spec((d_pad, d_pad)),                     # W2
        _invariant_spec((1, d_pad)),                         # b2
        _invariant_spec((d_pad, t_pad)),                     # Wp
        _invariant_spec((1, t_pad)),                         # bp
    ]
    out_spec = pl.BlockSpec((b_pad, t_pad), lambda p, i: (0, 0))

    scratch_shapes = [
        pltpu.VMEM((n_pad, d_pad), jnp.bfloat16),            # layer-1 embeddings
        pltpu.VMEM((b_pad, d_pad), jnp.float32),             # pooled accumulator
    ]
    if hoist_xw1:
        scratch_shapes.append(pltpu.VMEM((n_pad, d_pad), jnp.bfloat16))   # x @ W1

    # Both axes "arbitrary": later phases depend on all earlier row blocks
    # (shared h1/xW1 scratch) and pooling accumulates across row blocks.
    compiler_params = pltpu.CompilerParams(
        dimension_semantics=("arbitrary", "arbitrary"),
        vmem_limit_bytes=vmem_limit,
    )

    out_pad = pl.pallas_call(
        _make_kernel(tn, b_pad, hoist_xw1, adj_resident),
        out_shape=jax.ShapeDtypeStruct((b_pad, t_pad), jnp.float32),
        grid_spec=pltpu.PrefetchScalarGridSpec(
            num_scalar_prefetch=0,
            grid=grid,
            in_specs=in_specs,
            out_specs=out_spec,
            scratch_shapes=scratch_shapes,
        ),
        compiler_params=compiler_params,
    )(x_p, adj, batch_p, invc_p, w1_p, b1_p, w2_p, b2_p, wp_p, bp_p)

    return out_pad[:num_graphs, :t]


def _reference_forward(x, edge_index, batch, params, num_graphs):
    """Pure-JAX f32 reference of the same 2-layer GIN surrogate."""
    n = x.shape[0]
    src, dst = edge_index[0], edge_index[1]
    a = jnp.zeros((n, n), jnp.float32).at[dst, src].add(1.0) + jnp.eye(n, dtype=jnp.float32)
    h1 = jax.nn.relu(a @ (x @ params["w1"]) + params["b1"])
    h2 = a @ (h1 @ params["w2"]) + params["b2"]
    counts = jax.ops.segment_sum(jnp.ones((n,), jnp.float32), batch,
                                 num_segments=num_graphs)
    sums = jax.ops.segment_sum(h2, batch, num_segments=num_graphs)
    pooled = sums / jnp.maximum(counts, 1.0)[:, None]
    return pooled @ params["wp"] + params["bp"]


def init_params(key, in_feat, emb_dim, num_tasks):
    k1, k2, k3 = jax.random.split(key, 3)
    scale = 0.1
    return {
        "w1": scale * jax.random.normal(k1, (in_feat, emb_dim), jnp.float32),
        "b1": jnp.zeros((1, emb_dim), jnp.float32),
        "w2": scale * jax.random.normal(k2, (emb_dim, emb_dim), jnp.float32),
        "b2": jnp.zeros((1, emb_dim), jnp.float32),
        # graph_pred_linear: PyTorch Linear(emb_dim, num_tasks); stored already
        # transposed to [emb_dim, num_tasks] for y = g @ W + b.
        "wp": scale * jax.random.normal(k3, (emb_dim, num_tasks), jnp.float32),
        "bp": jnp.zeros((1, num_tasks), jnp.float32),
    }


if __name__ == "__main__":
    key = jax.random.PRNGKey(0)
    k_x, k_e, k_p = jax.random.split(key, 3)

    # Small synthetic molecular batch.
    N = 32          # total nodes
    F = 16          # input node feature dim
    D = 32          # emb_dim
    B = 4           # number of graphs in the batch
    T = 8           # num_tasks
    E = 64          # number of directed edges

    x = jax.random.normal(k_x, (N, F), jnp.float32)
    edge_index = jax.random.randint(k_e, (2, E), 0, N, dtype=jnp.int32)
    edge_attr = jnp.zeros((E, 2), jnp.int32)                     # placeholder edge attrs
    batch = jnp.repeat(jnp.arange(B, dtype=jnp.int32), N // B)   # [N]

    params = init_params(k_p, F, D, T)

    fwd = jax.jit(functools.partial(gnn_graphpred_forward, num_graphs=B))
    out = fwd(x, edge_index, edge_attr, batch, params)
    jax.block_until_ready(out)

    ref = _reference_forward(x, edge_index, batch, params, B)
    assert out.shape == (B, T) and out.dtype == jnp.float32
    assert bool(jnp.all(jnp.isfinite(out)))
    assert bool(jnp.allclose(out, ref, rtol=1e-1, atol=1e-1)), (
        "max abs err %f" % float(jnp.max(jnp.abs(out - ref))))
    print("KERNEL_OK")
</pallas_src>

<mosaic_0001>
module attributes {stable_mosaic.version = 11 : i64} {
  func.func private @main(%arg0: i32) attributes {dimension_semantics = [#tpu.dimension_semantics<core_parallel>], iteration_bounds = array<i64: 2>, tpu.core_type = #tpu.core_type<sc_scalar_subcore>, window_params = []} {
    return
  }
}

module attributes {stable_mosaic.version = 11 : i64} {
  func.func private @main(%arg0: i32) attributes {dimension_semantics = [#tpu.dimension_semantics<core_parallel>], iteration_bounds = array<i64: 2>, tpu.core_type = #tpu.core_type<sc_scalar_subcore>, window_params = []} {
    return
  }
}

module attributes {stable_mosaic.version = 11 : i64} {
  func.func @kernel(%arg0: i32, %arg1: i32, %arg2: memref<128x128xbf16, #tpu.memory_space<vmem>>, %arg3: memref<128x128xi8, #tpu.memory_space<vmem>>, %arg4: memref<1x128xi32, #tpu.memory_space<vmem>>, %arg5: memref<8x1xf32, #tpu.memory_space<vmem>>, %arg6: memref<128x128xbf16, #tpu.memory_space<vmem>>, %arg7: memref<1x128xf32, #tpu.memory_space<vmem>>, %arg8: memref<128x128xbf16, #tpu.memory_space<vmem>>, %arg9: memref<1x128xf32, #tpu.memory_space<vmem>>, %arg10: memref<128x128xbf16, #tpu.memory_space<vmem>>, %arg11: memref<1x128xf32, #tpu.memory_space<vmem>>, %arg12: memref<8x128xf32, #tpu.memory_space<vmem>>, %arg13: memref<128x128xbf16, #tpu.memory_space<vmem>>, %arg14: memref<8x128xf32, #tpu.memory_space<vmem>>) attributes {dimension_semantics = [#tpu.dimension_semantics<arbitrary>, #tpu.dimension_semantics<arbitrary>], iteration_bounds = array<i64: 2, 1>, scalar_prefetch = 0 : i64, scratch_operands = 2 : i64, tpu.core_type = #tpu.core_type<tc>, window_params = [{pipeline_mode = #tpu.pipeline_mode<synchronous>, transform_indices = @transform_0, window_bounds = array<i64: 128, 128>}, {pipeline_mode = #tpu.pipeline_mode<synchronous>, transform_indices = @transform_1, window_bounds = array<i64: 128, 128>}, {transform_indices = @transform_2, window_bounds = array<i64: 1, 128>}, {pipeline_mode = #tpu.pipeline_mode<synchronous>, transform_indices = @transform_3, window_bounds = array<i64: 8, 1>}, {pipeline_mode = #tpu.pipeline_mode<synchronous>, transform_indices = @transform_4, window_bounds = array<i64: 128, 128>}, {pipeline_mode = #tpu.pipeline_mode<synchronous>, transform_indices = @transform_5, window_bounds = array<i64: 1, 128>}, {pipeline_mode = #tpu.pipeline_mode<synchronous>, transform_indices = @transform_6, window_bounds = array<i64: 128, 128>}, {pipeline_mode = #tpu.pipeline_mode<synchronous>, transform_indices = @transform_7, window_bounds = array<i64: 1, 128>}, {pipeline_mode = #tpu.pipeline_mode<synchronous>, transform_indices = @transform_8, window_bounds = array<i64: 128, 128>}, {pipeline_mode = #tpu.pipeline_mode<synchronous>, transform_indices = @transform_9, window_bounds = array<i64: 1, 128>}, {pipeline_mode = #tpu.pipeline_mode<synchronous>, transform_indices = @transform_10, window_bounds = array<i64: 8, 128>}]} {
    %c128_i32 = arith.constant 128 : i32
    %0 = arith.muli %arg1, %c128_i32 : i32
    %1 = tpu.assume_multiple %0, 128 : i32
    %c0_i32 = arith.constant 0 : i32
    %2 = arith.cmpi eq, %arg0, %c0_i32 : i32
    %c0_i32_0 = arith.constant 0 : i32
    %3 = arith.cmpi eq, %arg1, %c0_i32_0 : i32
    %4 = arith.andi %2, %3 : i1
    %5 = arith.extui %4 : i1 to i32
    %c0_i32_1 = arith.constant 0 : i32
    %6 = arith.cmpi ne, %5, %c0_i32_1 : i32
    scf.if %6 {
      %cst = arith.constant 0.000000e+00 : f32
      %13 = vector.broadcast %cst : f32 to vector<8x128xf32>
      %c0 = arith.constant 0 : index
      %c0_5 = arith.constant 0 : index
      %14 = vector.load %arg14[%c0, %c0_5] : memref<8x128xf32, #tpu.memory_space<vmem>>, vector<8x128xf32>
      tpu.vector_store %arg14[%c0, %c0_5], %13 {strides = array<i32>} : memref<8x128xf32, #tpu.memory_space<vmem>>, vector<8x128xf32>,
      %cst_6 = arith.constant 0.000000e+00 : f32
      %15 = vector.broadcast %cst_6 : f32 to vector<8x128xf32>
      %c0_7 = arith.constant 0 : index
      %c0_8 = arith.constant 0 : index
      %16 = vector.load %arg12[%c0_7, %c0_8] : memref<8x128xf32, #tpu.memory_space<vmem>>, vector<8x128xf32>
      tpu.vector_store %arg12[%c0_7, %c0_8], %15 {strides = array<i32>} : memref<8x128xf32, #tpu.memory_space<vmem>>, vector<8x128xf32>,
    } else {
    }
    %c0_i32_2 = arith.constant 0 : i32
    %7 = arith.cmpi eq, %arg0, %c0_i32_2 : i32
    %8 = arith.extui %7 : i1 to i32
    %c0_i32_3 = arith.constant 0 : i32
    %9 = arith.cmpi ne, %8, %c0_i32_3 : i32
    scf.if %9 {
      %13 = arith.index_cast %1 : i32 to index
      %c0 = arith.constant 0 : index
      %14 = vector.load %arg3[%13, %c0] : memref<128x128xi8, #tpu.memory_space<vmem>>, vector<128x128xi8>
      %15 = arith.sitofp %14 : vector<128x128xi8> to vector<128x128xf32>
      %16 = arith.truncf %15 : vector<128x128xf32> to vector<128x128xbf16>
      %c0_5 = arith.constant 0 : index
      %c0_6 = arith.constant 0 : index
      %17 = vector.load %arg2[%c0_5, %c0_6] : memref<128x128xbf16, #tpu.memory_space<vmem>>, vector<128x128xbf16>
      %cst = arith.constant dense<0.000000e+00> : vector<128x128xf32>
      %18 = tpu.matmul %16, %17, %cst {dimension_numbers = #tpu.dot_dimension_numbers<[1], [0], [0], [1], [0, 0, 1, 1], [], []>} : vector<128x128xbf16>, vector<128x128xbf16>, vector<128x128xf32> -> vector<128x128xf32>
      %19 = arith.truncf %18 : vector<128x128xf32> to vector<128x128xbf16>
      %c0_7 = arith.constant 0 : index
      %c0_8 = arith.constant 0 : index
      %20 = vector.load %arg6[%c0_7, %c0_8] : memref<128x128xbf16, #tpu.memory_space<vmem>>, vector<128x128xbf16>
      %cst_9 = arith.constant dense<0.000000e+00> : vector<128x128xf32>
      %21 = tpu.matmul %19, %20, %cst_9 {dimension_numbers = #tpu.dot_dimension_numbers<[1], [0], [0], [1], [0, 0, 1, 1], [], []>} : vector<128x128xbf16>, vector<128x128xbf16>, vector<128x128xf32> -> vector<128x128xf32>
      %c0_10 = arith.constant 0 : index
      %c0_11 = arith.constant 0 : index
      %22 = vector.load %arg7[%c0_10, %c0_11] : memref<1x128xf32, #tpu.memory_space<vmem>>, vector<1x128xf32>
      %23 = vector.broadcast %22 : vector<1x128xf32> to vector<128x128xf32>
      %24 = arith.addf %21, %23 : vector<128x128xf32>
      %cst_12 = arith.constant 0.000000e+00 : f32
      %25 = vector.broadcast %cst_12 : f32 to vector<128x128xf32>
      %26 = arith.maximumf %24, %25 : vector<128x128xf32>
      %27 = arith.truncf %26 : vector<128x128xf32> to vector<128x128xbf16>
      %28 = arith.index_cast %1 : i32 to index
      %c0_13 = arith.constant 0 : index
      %29 = vector.load %arg13[%28, %c0_13] : memref<128x128xbf16, #tpu.memory_space<vmem>>, vector<128x128xbf16>
      tpu.vector_store %arg13[%28, %c0_13], %27 {strides = array<i32>} : memref<128x128xbf16, #tpu.memory_space<vmem>>, vector<128x128xbf16>,
    } else {
    }
    %c1_i32 = arith.constant 1 : i32
    %10 = arith.cmpi eq, %arg0, %c1_i32 : i32
    %11 = arith.extui %10 : i1 to i32
    %c0_i32_4 = arith.constant 0 : i32
    %12 = arith.cmpi ne, %11, %c0_i32_4 : i32
    scf.if %12 {
      %13 = arith.index_cast %1 : i32 to index
      %c0 = arith.constant 0 : index
      %14 = vector.load %arg3[%13, %c0] : memref<128x128xi8, #tpu.memory_space<vmem>>, vector<128x128xi8>
      %15 = arith.sitofp %14 : vector<128x128xi8> to vector<128x128xf32>
      %16 = arith.truncf %15 : vector<128x128xf32> to vector<128x128xbf16>
      %c0_5 = arith.constant 0 : index
      %c0_6 = arith.constant 0 : index
      %17 = vector.load %arg13[%c0_5, %c0_6] : memref<128x128xbf16, #tpu.memory_space<vmem>>, vector<128x128xbf16>
      %cst = arith.constant dense<0.000000e+00> : vector<128x128xf32>
      %18 = tpu.matmul %16, %17, %cst {dimension_numbers = #tpu.dot_dimension_numbers<[1], [0], [0], [1], [0, 0, 1, 1], [], []>} : vector<128x128xbf16>, vector<128x128xbf16>, vector<128x128xf32> -> vector<128x128xf32>
      %19 = arith.truncf %18 : vector<128x128xf32> to vector<128x128xbf16>
      %c0_7 = arith.constant 0 : index
      %c0_8 = arith.constant 0 : index
      %20 = vector.load %arg8[%c0_7, %c0_8] : memref<128x128xbf16, #tpu.memory_space<vmem>>, vector<128x128xbf16>
      %cst_9 = arith.constant dense<0.000000e+00> : vector<128x128xf32>
      %21 = tpu.matmul %19, %20, %cst_9 {dimension_numbers = #tpu.dot_dimension_numbers<[1], [0], [0], [1], [0, 0, 1, 1], [], []>} : vector<128x128xbf16>, vector<128x128xbf16>, vector<128x128xf32> -> vector<128x128xf32>
      %c0_10 = arith.constant 0 : index
      %c0_11 = arith.constant 0 : index
      %22 = vector.load %arg9[%c0_10, %c0_11] : memref<1x128xf32, #tpu.memory_space<vmem>>, vector<1x128xf32>
      %23 = vector.broadcast %22 : vector<1x128xf32> to vector<128x128xf32>
      %24 = arith.addf %21, %23 : vector<128x128xf32>
      %25 = tpu.iota {dimensions = array<i32: 0>} : vector<8x128xi32>
      %c0_12 = arith.constant 0 : index
      %c0_13 = arith.constant 0 : index
      %26 = vector.load %arg4[%c0_12, %c0_13] : memref<1x128xi32, #tpu.memory_space<vmem>>, vector<1x128xi32>
      %27 = vector.broadcast %26 : vector<1x128xi32> to vector<8x128xi32>
      %28 = arith.cmpi eq, %25, %27 : vector<8x128xi32>
      %29 = arith.extui %28 : vector<8x128xi1> to vector<8x128xi32>
      %30 = arith.sitofp %29 : vector<8x128xi32> to vector<8x128xf32>
      %c0_14 = arith.constant 0 : index
      %c0_15 = arith.constant 0 : index
      %31 = vector.load %arg14[%c0_14, %c0_15] : memref<8x128xf32, #tpu.memory_space<vmem>>, vector<8x128xf32>
      %cst_16 = arith.constant dense<0.000000e+00> : vector<8x128xf32>
      %32 = tpu.matmul %30, %24, %cst_16 {dimension_numbers = #tpu.dot_dimension_numbers<[1], [0], [0], [1], [0, 0, 1, 1], [], []>} : vector<8x128xf32>, vector<128x128xf32>, vector<8x128xf32> -> vector<8x128xf32>
      %33 = arith.addf %31, %32 : vector<8x128xf32>
      %c0_17 = arith.constant 0 : index
      %c0_18 = arith.constant 0 : index
      %34 = vector.load %arg14[%c0_17, %c0_18] : memref<8x128xf32, #tpu.memory_space<vmem>>, vector<8x128xf32>
      tpu.vector_store %arg14[%c0_17, %c0_18], %33 {strides = array<i32>} : memref<8x128xf32, #tpu.memory_space<vmem>>, vector<8x128xf32>,
      %c0_i32_19 = arith.constant 0 : i32
      %35 = arith.cmpi eq, %arg1, %c0_i32_19 : i32
      %36 = arith.extui %35 : i1 to i32
      %c0_i32_20 = arith.constant 0 : i32
      %37 = arith.cmpi ne, %36, %c0_i32_20 : i32
      scf.if %37 {
        %c0_21 = arith.constant 0 : index
        %c0_22 = arith.constant 0 : index
        %38 = vector.load %arg14[%c0_21, %c0_22] : memref<8x128xf32, #tpu.memory_space<vmem>>, vector<8x128xf32>
        %c0_23 = arith.constant 0 : index
        %c0_24 = arith.constant 0 : index
        %39 = vector.load %arg5[%c0_23, %c0_24] : memref<8x1xf32, #tpu.memory_space<vmem>>, vector<8x1xf32>
        %40 = vector.broadcast %39 : vector<8x1xf32> to vector<8x128xf32>
        %41 = arith.mulf %38, %40 : vector<8x128xf32>
        %42 = arith.truncf %41 : vector<8x128xf32> to vector<8x128xbf16>
        %c0_25 = arith.constant 0 : index
        %c0_26 = arith.constant 0 : index
        %43 = vector.load %arg10[%c0_25, %c0_26] : memref<128x128xbf16, #tpu.memory_space<vmem>>, vector<128x128xbf16>
        %cst_27 = arith.constant dense<0.000000e+00> : vector<8x128xf32>
        %44 = tpu.matmul %42, %43, %cst_27 {dimension_numbers = #tpu.dot_dimension_numbers<[1], [0], [0], [1], [0, 0, 1, 1], [], []>} : vector<8x128xbf16>, vector<128x128xbf16>, vector<8x128xf32> -> vector<8x128xf32>
        %c0_28 = arith.constant 0 : index
        %c0_29 = arith.constant 0 : index
        %45 = vector.load %arg11[%c0_28, %c0_29] : memref<1x128xf32, #tpu.memory_space<vmem>>, vector<1x128xf32>
        %46 = vector.broadcast %45 : vector<1x128xf32> to vector<8x128xf32>
        %47 = arith.addf %44, %46 : vector<8x128xf32>
        %c0_30 = arith.constant 0 : index
        %c0_31 = arith.constant 0 : index
        %48 = vector.load %arg12[%c0_30, %c0_31] : memref<8x128xf32, #tpu.memory_space<vmem>>, vector<8x128xf32>
        tpu.vector_store %arg12[%c0_30, %c0_31], %47 {strides = array<i32>} : memref<8x128xf32, #tpu.memory_space<vmem>>, vector<8x128xf32>,
      } else {
      }
    } else {
    }
    return
  }
  func.func @transform_0(%arg0: i32, %arg1: i32) -> (i32, i32) {
    %c0_i32 = arith.constant 0 : i32
    %c0_i32_0 = arith.constant 0 : i32
    %c0_i32_1 = arith.constant 0 : i32
    return %c0_i32, %c0_i32_0 : i32, i32
  }
  func.func @transform_1(%arg0: i32, %arg1: i32) -> (i32, i32) {
    %c0_i32 = arith.constant 0 : i32
    %c0_i32_0 = arith.constant 0 : i32
    %c0_i32_1 = arith.constant 0 : i32
    return %c0_i32, %c0_i32_0 : i32, i32
  }
  func.func @transform_2(%arg0: i32, %arg1: i32) -> (i32, i32) {
    %c0_i32 = arith.constant 0 : i32
    %c0_i32_0 = arith.constant 0 : i32
    return %c0_i32, %arg1 : i32, i32
  }
  func.func @transform_3(%arg0: i32, %arg1: i32) -> (i32, i32) {
    %c0_i32 = arith.constant 0 : i32
    %c0_i32_0 = arith.constant 0 : i32
    %c0_i32_1 = arith.constant 0 : i32
    return %c0_i32, %c0_i32_0 : i32, i32
  }
  func.func @transform_4(%arg0: i32, %arg1: i32) -> (i32, i32) {
    %c0_i32 = arith.constant 0 : i32
    %c0_i32_0 = arith.constant 0 : i32
    %c0_i32_1 = arith.constant 0 : i32
    return %c0_i32, %c0_i32_0 : i32, i32
  }
  func.func @transform_5(%arg0: i32, %arg1: i32) -> (i32, i32) {
    %c0_i32 = arith.constant 0 : i32
    %c0_i32_0 = arith.constant 0 : i32
    %c0_i32_1 = arith.constant 0 : i32
    return %c0_i32, %c0_i32_0 : i32, i32
  }
  func.func @transform_6(%arg0: i32, %arg1: i32) -> (i32, i32) {
    %c0_i32 = arith.constant 0 : i32
    %c0_i32_0 = arith.constant 0 : i32
    %c0_i32_1 = arith.constant 0 : i32
    return %c0_i32, %c0_i32_0 : i32, i32
  }
  func.func @transform_7(%arg0: i32, %arg1: i32) -> (i32, i32) {
    %c0_i32 = arith.constant 0 : i32
    %c0_i32_0 = arith.constant 0 : i32
    %c0_i32_1 = arith.constant 0 : i32
    return %c0_i32, %c0_i32_0 : i32, i32
  }
  func.func @transform_8(%arg0: i32, %arg1: i32) -> (i32, i32) {
    %c0_i32 = arith.constant 0 : i32
    %c0_i32_0 = arith.constant 0 : i32
    %c0_i32_1 = arith.constant 0 : i32
    return %c0_i32, %c0_i32_0 : i32, i32
  }
  func.func @transform_9(%arg0: i32, %arg1: i32) -> (i32, i32) {
    %c0_i32 = arith.constant 0 : i32
    %c0_i32_0 = arith.constant 0 : i32
    %c0_i32_1 = arith.constant 0 : i32
    return %c0_i32, %c0_i32_0 : i32, i32
  }
  func.func @transform_10(%arg0: i32, %arg1: i32) -> (i32, i32) {
    %c0_i32 = arith.constant 0 : i32
    %c0_i32_0 = arith.constant 0 : i32
    %c0_i32_1 = arith.constant 0 : i32
    return %c0_i32, %c0_i32_0 : i32, i32
  }
}

</mosaic_0001>

<llo_original>
// kernel: gnn_graphpred_forward.1
$region0: #{gnn_graphpred_forward.1}
  #allocation0 [shape = 'u32[]', space=smem, size = 0x4, offset = 0x4, fixed_abs, tag = 'smem constant byte address 0x4 - core index']
  #allocation1 [shape = 'u32[144,128]{1,0:T(1,128)}', space=vmem, size = 0x12000, scoped, tag = 'internal scratch']
  #allocation2 [shape = 'bf16[128,128]{1,0:T(8,128)(2,1)}', space=vmem, size = 0x8000, scoped, tag = 'scratch operand']
  #allocation3 [shape = 'f32[8,128]{1,0:T(8,128)}', space=vmem, size = 0x1000, scoped, tag = 'scratch operand']
  %s0 = inlined_call_operand.vmem [shape: bf16[128,128], index: 0, kind: input, shape index: {}]
  %s1 = inlined_call_operand.vmem [shape: s8[128,128], index: 1, kind: input, shape index: {}]
  %s2 = inlined_call_operand.vmem [shape: s32[1,128], index: 2, kind: input, shape index: {}]
  %s3 = inlined_call_operand.vmem [shape: f32[8,1], index: 3, kind: input, shape index: {}]
  %s4 = inlined_call_operand.vmem [shape: bf16[128,128], index: 4, kind: input, shape index: {}]
  %s5 = inlined_call_operand.vmem [shape: f32[1,128], index: 5, kind: input, shape index: {}]
  %s6 = inlined_call_operand.vmem [shape: bf16[128,128], index: 6, kind: input, shape index: {}]
  %s7 = inlined_call_operand.vmem [shape: f32[1,128], index: 7, kind: input, shape index: {}]
  %s8 = inlined_call_operand.vmem [shape: bf16[128,128], index: 8, kind: input, shape index: {}]
  %s9 = inlined_call_operand.vmem [shape: f32[1,128], index: 9, kind: input, shape index: {}]
  %s10 = inlined_call_operand.vmem [shape: f32[8,128], index: 10, kind: output, shape index: {}]
  %s11 = sld [smem:[#allocation0]]
  $region89: #{gnn_graphpred_forward.1} parent=0
    _
  %s13 = ssub.s32 1, %s11
  %s14 = scalar_select 0, %s13, %s11
  loop: start=0, step=1, limit=4
  $region2: #{gnn_graphpred_forward.1} parent=0 // loop_pre_header
    _
  $region3: #{gnn_graphpred_forward.1} parent=0 // loop_header
    %s16 = sphi 0, %s20
    %p17 = scmp.ge.s32.totalorder %s16, 4
    %s23 = sphi 0, %s35
    %s24 = sphi 0, %s31
    %s25 = sphi 0, %s23
    %s26 = sphi 0, %s24
    %s27 = sphi 0, %s25
    %s28 = sphi 0, %s26
    %s36 = sphi 0, %s36
    %s38 = sphi 0, %s36
    %s39 = sphi 0, %s38
    %s53 = sphi 0, %s39
    %s57 = sphi 0, %s57
    %s59 = sphi 0, %s57
    %s60 = sphi 0, %s59
    %s74 = sphi 0, %s60
    %s80 = sphi 0, %s82
    %s83 = sphi 0, %s80
    %s84 = sphi 0, %s83
    %s100 = sphi 0, %s84
    %s104 = sphi 0, %s104
    %s106 = sphi 0, %s104
    %s107 = sphi 0, %s106
    %s121 = sphi 0, %s107
    %s125 = sphi 0, %s125
    %s127 = sphi 0, %s125
    %s128 = sphi 0, %s127
    %s142 = sphi 0, %s128
    %s146 = sphi 0, %s146
    %s148 = sphi 0, %s146
    %s149 = sphi 0, %s148
    %s163 = sphi 0, %s149
    %s167 = sphi 0, %s167
    %s169 = sphi 0, %s167
    %s170 = sphi 0, %s169
    %s184 = sphi 0, %s170
    %s188 = sphi 0, %s188
    %s190 = sphi 0, %s188
    %s191 = sphi 0, %s190
    %s205 = sphi 0, %s191
    %s209 = sphi 0, %s209
    %s211 = sphi 0, %s209
    %s212 = sphi 0, %s211
    %s226 = sphi 0, %s212
    %s230 = sphi 0, %s230
    %s232 = sphi 0, %s230
    %s233 = sphi 0, %s232
    %s247 = sphi 0, %s233
    %s251 = sphi 0, %s251
    %s253 = sphi 0, %s251
    %s254 = sphi 0, %s253
    %s268 = sphi 0, %s254
  $region4: #{gnn_graphpred_forward.1} parent=0 // loop_header_branch
    %19 = sbr.rel (%p17) target = $region8
  $region5: #{gnn_graphpred_forward.1} parent=0 // loop_body
    %s21 = ssub.s32 %s16, 1
    %s22 = ssub.s32 %s16, 2
    %s29 = sadd.s32 1, %s24
    %p30 = scmp.ge.s32.totalorder %s29, 1
    %s31 = scalar_select %p30, 0, %s29
    %s32 = sadd.s32 1, %s23
    %s33 = scalar_select %p30, %s32, %s23
    %p34 = scmp.ge.s32.totalorder %s33, 2
    %s35 = scalar_select %p34, 0, %s33
    %s37 = sadd.s32 %s36, 1
    %p40 = scmp.eq.s32.totalorder %s16, 1
    %p41 = scmp.ne.s32.totalorder %s36, %s38
    %p42 = scmp.eq.s32.totalorder %s16, 0
    %p43 = por %p41, %p42
    %p44 = scmp.ne.s32.totalorder %s36, %s38
    %p45 = scmp.eq.s32.totalorder %s21, 1
    %p46 = por %p44, %p45
    %p47 = scmp.ne.s32.totalorder %s38, %s39
    %p48 = scmp.eq.s32.totalorder %s21, 0
    %p49 = por %p47, %p48
    %p50 = scmp.ne.s32.totalorder %s38, %s39
    %p51 = scmp.eq.s32.totalorder %s22, 1
    %p52 = por %p50, %p51
    %p54 = scmp.ne.s32.totalorder %s39, %s53
    %p55 = scmp.eq.s32.totalorder %s22, 0
    %p56 = por %p54, %p55
    %s58 = sadd.s32 %s57, 1
    %p61 = scmp.eq.s32.totalorder %s16, 1
    %p62 = scmp.ne.s32.totalorder %s57, %s59
    %p63 = scmp.eq.s32.totalorder %s16, 0
    %p64 = por %p62, %p63
    %p65 = scmp.ne.s32.totalorder %s57, %s59
    %p66 = scmp.eq.s32.totalorder %s21, 1
    %p67 = por %p65, %p66
    %p68 = scmp.ne.s32.totalorder %s59, %s60
    %p69 = scmp.eq.s32.totalorder %s21, 0
    %p70 = por %p68, %p69
    %p71 = scmp.ne.s32.totalorder %s59, %s60
    %p72 = scmp.eq.s32.totalorder %s22, 1
    %p73 = por %p71, %p72
    %p75 = scmp.ne.s32.totalorder %s60, %s74
    %p76 = scmp.eq.s32.totalorder %s22, 0
    %p77 = por %p75, %p76
    %s78 = ssub.s32 %s24, %s31
    %p79 = scmp.eq.s32.totalorder %s78, 0
    %s81 = sadd.s32 %s80, 1
    %s82 = scalar_select %p79, %s80, %s81
    %p85 = pneg %p79
    %p86 = scmp.eq.s32.totalorder %s16, 1
    %p87 = por %p85, %p86
    %p88 = scmp.ne.s32.totalorder %s80, %s83
    %p89 = scmp.eq.s32.totalorder %s16, 0
    %p90 = por %p88, %p89
    %p91 = scmp.ne.s32.totalorder %s80, %s83
    %p92 = scmp.eq.s32.totalorder %s21, 1
    %p93 = por %p91, %p92
    %p94 = scmp.ne.s32.totalorder %s83, %s84
    %p95 = scmp.eq.s32.totalorder %s21, 0
    %p96 = por %p94, %p95
    %p97 = scmp.ne.s32.totalorder %s83, %s84
    %p98 = scmp.eq.s32.totalorder %s22, 1
    %p99 = por %p97, %p98
    %p101 = scmp.ne.s32.totalorder %s84, %s100
    %p102 = scmp.eq.s32.totalorder %s22, 0
    %p103 = por %p101, %p102
    %s105 = sadd.s32 %s104, 1
    %p108 = scmp.eq.s32.totalorder %s16, 1
    %p109 = scmp.ne.s32.totalorder %s104, %s106
    %p110 = scmp.eq.s32.totalorder %s16, 0
    %p111 = por %p109, %p110
    %p112 = scmp.ne.s32.totalorder %s104, %s106
    %p113 = scmp.eq.s32.totalorder %s21, 1
    %p114 = por %p112, %p113
    %p115 = scmp.ne.s32.totalorder %s106, %s107
    %p116 = scmp.eq.s32.totalorder %s21, 0
    %p117 = por %p115, %p116
    %p118 = scmp.ne.s32.totalorder %s106, %s107
    %p119 = scmp.eq.s32.totalorder %s22, 1
    %p120 = por %p118, %p119
    %p122 = scmp.ne.s32.totalorder %s107, %s121
    %p123 = scmp.eq.s32.totalorder %s22, 0
    %p124 = por %p122, %p123
    %s126 = sadd.s32 %s125, 1
    %p129 = scmp.eq.s32.totalorder %s16, 1
    %p130 = scmp.ne.s32.totalorder %s125, %s127
    %p131 = scmp.eq.s32.totalorder %s16, 0
    %p132 = por %p130, %p131
    %p133 = scmp.ne.s32.totalorder %s125, %s127
    %p134 = scmp.eq.s32.totalorder %s21, 1
    %p135 = por %p133, %p134
    %p136 = scmp.ne.s32.totalorder %s127, %s128
    %p137 = scmp.eq.s32.totalorder %s21, 0
    %p138 = por %p136, %p137
    %p139 = scmp.ne.s32.totalorder %s127, %s128
    %p140 = scmp.eq.s32.totalorder %s22, 1
    %p141 = por %p139, %p140
    %p143 = scmp.ne.s32.totalorder %s128, %s142
    %p144 = scmp.eq.s32.totalorder %s22, 0
    %p145 = por %p143, %p144
    %s147 = sadd.s32 %s146, 1
    %p150 = scmp.eq.s32.totalorder %s16, 1
    %p151 = scmp.ne.s32.totalorder %s146, %s148
    %p152 = scmp.eq.s32.totalorder %s16, 0
    %p153 = por %p151, %p152
    %p154 = scmp.ne.s32.totalorder %s146, %s148
    %p155 = scmp.eq.s32.totalorder %s21, 1
    %p156 = por %p154, %p155
    %p157 = scmp.ne.s32.totalorder %s148, %s149
    %p158 = scmp.eq.s32.totalorder %s21, 0
    %p159 = por %p157, %p158
    %p160 = scmp.ne.s32.totalorder %s148, %s149
    %p161 = scmp.eq.s32.totalorder %s22, 1
    %p162 = por %p160, %p161
    %p164 = scmp.ne.s32.totalorder %s149, %s163
    %p165 = scmp.eq.s32.totalorder %s22, 0
    %p166 = por %p164, %p165
    %s168 = sadd.s32 %s167, 1
    %p171 = scmp.eq.s32.totalorder %s16, 1
    %p172 = scmp.ne.s32.totalorder %s167, %s169
    %p173 = scmp.eq.s32.totalorder %s16, 0
    %p174 = por %p172, %p173
    %p175 = scmp.ne.s32.totalorder %s167, %s169
    %p176 = scmp.eq.s32.totalorder %s21, 1
    %p177 = por %p175, %p176
    %p178 = scmp.ne.s32.totalorder %s169, %s170
    %p179 = scmp.eq.s32.totalorder %s21, 0
    %p180 = por %p178, %p179
    %p181 = scmp.ne.s32.totalorder %s169, %s170
    %p182 = scmp.eq.s32.totalorder %s22, 1
    %p183 = por %p181, %p182
    %p185 = scmp.ne.s32.totalorder %s170, %s184
    %p186 = scmp.eq.s32.totalorder %s22, 0
    %p187 = por %p185, %p186
    %s189 = sadd.s32 %s188, 1
    %p192 = scmp.eq.s32.totalorder %s16, 1
    %p193 = scmp.ne.s32.totalorder %s188, %s190
    %p194 = scmp.eq.s32.totalorder %s16, 0
    %p195 = por %p193, %p194
    %p196 = scmp.ne.s32.totalorder %s188, %s190
    %p197 = scmp.eq.s32.totalorder %s21, 1
    %p198 = por %p196, %p197
    %p199 = scmp.ne.s32.totalorder %s190, %s191
    %p200 = scmp.eq.s32.totalorder %s21, 0
    %p201 = por %p199, %p200
    %p202 = scmp.ne.s32.totalorder %s190, %s191
    %p203 = scmp.eq.s32.totalorder %s22, 1
    %p204 = por %p202, %p203
    %p206 = scmp.ne.s32.totalorder %s191, %s205
    %p207 = scmp.eq.s32.totalorder %s22, 0
    %p208 = por %p206, %p207
    %s210 = sadd.s32 %s209, 1
    %p213 = scmp.eq.s32.totalorder %s16, 1
    %p214 = scmp.ne.s32.totalorder %s209, %s211
    %p215 = scmp.eq.s32.totalorder %s16, 0
    %p216 = por %p214, %p215
    %p217 = scmp.ne.s32.totalorder %s209, %s211
    %p218 = scmp.eq.s32.totalorder %s21, 1
    %p219 = por %p217, %p218
    %p220 = scmp.ne.s32.totalorder %s211, %s212
    %p221 = scmp.eq.s32.totalorder %s21, 0
    %p222 = por %p220, %p221
    %p223 = scmp.ne.s32.totalorder %s211, %s212
    %p224 = scmp.eq.s32.totalorder %s22, 1
    %p225 = por %p223, %p224
    %p227 = scmp.ne.s32.totalorder %s212, %s226
    %p228 = scmp.eq.s32.totalorder %s22, 0
    %p229 = por %p227, %p228
    %s231 = sadd.s32 %s230, 1
    %p234 = scmp.eq.s32.totalorder %s16, 1
    %p235 = scmp.ne.s32.totalorder %s230, %s232
    %p236 = scmp.eq.s32.totalorder %s16, 0
    %p237 = por %p235, %p236
    %p238 = scmp.ne.s32.totalorder %s230, %s232
    %p239 = scmp.eq.s32.totalorder %s21, 1
    %p240 = por %p238, %p239
    %p241 = scmp.ne.s32.totalorder %s232, %s233
    %p242 = scmp.eq.s32.totalorder %s21, 0
    %p243 = por %p241, %p242
    %p244 = scmp.ne.s32.totalorder %s232, %s233
    %p245 = scmp.eq.s32.totalorder %s22, 1
    %p246 = por %p244, %p245
    %p248 = scmp.ne.s32.totalorder %s233, %s247
    %p249 = scmp.eq.s32.totalorder %s22, 0
    %p250 = por %p248, %p249
    %s252 = sadd.s32 %s251, 1
    %p255 = scmp.eq.s32.totalorder %s16, 1
    %p256 = scmp.ne.s32.totalorder %s251, %s253
    %p257 = scmp.eq.s32.totalorder %s16, 0
    %p258 = por %p256, %p257
    %p259 = scmp.ne.s32.totalorder %s251, %s253
    %p260 = scmp.eq.s32.totalorder %s21, 1
    %p261 = por %p259, %p260
    %p262 = scmp.ne.s32.totalorder %s253, %s254
    %p263 = scmp.eq.s32.totalorder %s21, 0
    %p264 = por %p262, %p263
    %p265 = scmp.ne.s32.totalorder %s253, %s254
    %p266 = scmp.eq.s32.totalorder %s22, 1
    %p267 = por %p265, %p266
    %p269 = scmp.ne.s32.totalorder %s254, %s268
    %p270 = scmp.eq.s32.totalorder %s22, 0
    %p271 = por %p269, %p270
    %p272 = scmp.le.s32.totalorder 1, %s16
    %p273 = scmp.lt.s32.totalorder %s16, 3
    %p274 = pnand %p272, %p273
    %p275 = pneg %p274
    // Predicated region
    $region9: #{gnn_graphpred_forward.1} parent=5 // pred_check
      _
    $region10: #{gnn_graphpred_forward.1} parent=5 // pred_check_branch
      %277 = sbr.rel (%p274) target = $region12
    $region11: #{gnn_graphpred_forward.1} parent=5 // pred_region
      %s278 = ssub.s32 %s16, 1
      // Predicated region
      $region13: #{gnn_graphpred_forward.1} parent=11 // pred_check
        %p279 = pneg %p49
      $region14: #{gnn_graphpred_forward.1} parent=11 // pred_check_branch
        %281 = sbr.rel (%p279) target = $region16
      $region15: #{gnn_graphpred_forward.1} parent=11 // pred_region
        _
      $region16: #{gnn_graphpred_forward.1} parent=11 // pred_fallthru
        _
      // Predicated region
      $region17: #{gnn_graphpred_forward.1} parent=11 // pred_check
        %p282 = pneg %p70
      $region18: #{gnn_graphpred_forward.1} parent=11 // pred_check_branch
        %284 = sbr.rel (%p282) target = $region20
      $region19: #{gnn_graphpred_forward.1} parent=11 // pred_region
        _
      $region20: #{gnn_graphpred_forward.1} parent=11 // pred_fallthru
        _
      // Predicated region
      $region21: #{gnn_graphpred_forward.1} parent=11 // pred_check
        %p285 = pneg %p96
      $region22: #{gnn_graphpred_forward.1} parent=11 // pred_check_branch
        %287 = sbr.rel (%p285) target = $region24
      $region23: #{gnn_graphpred_forward.1} parent=11 // pred_region
        %p288 = scmp.lt.s32.totalorder %s26, 0
        %s289 = scalar_select %p288, %s26, 0
        %s290 = scalar_lea.vmem %s2, %s289
      $region24: #{gnn_graphpred_forward.1} parent=11 // pred_fallthru
        _
      // Predicated region
      $region25: #{gnn_graphpred_forward.1} parent=11 // pred_check
        %p291 = pneg %p117
      $region26: #{gnn_graphpred_forward.1} parent=11 // pred_check_branch
        %293 = sbr.rel (%p291) target = $region28
      $region27: #{gnn_graphpred_forward.1} parent=11 // pred_region
        _
      $region28: #{gnn_graphpred_forward.1} parent=11 // pred_fallthru
        _
      // Predicated region
      $region29: #{gnn_graphpred_forward.1} parent=11 // pred_check
        %p294 = pneg %p138
      $region30: #{gnn_graphpred_forward.1} parent=11 // pred_check_branch
        %296 = sbr.rel (%p294) target = $region32
      $region31: #{gnn_graphpred_forward.1} parent=11 // pred_region
        _
      $region32: #{gnn_graphpred_forward.1} parent=11 // pred_fallthru
        _
      // Predicated region
      $region33: #{gnn_graphpred_forward.1} parent=11 // pred_check
        %p297 = pneg %p159
      $region34: #{gnn_graphpred_forward.1} parent=11 // pred_check_branch
        %299 = sbr.rel (%p297) target = $region36
      $region35: #{gnn_graphpred_forward.1} parent=11 // pred_region
        _
      $region36: #{gnn_graphpred_forward.1} parent=11 // pred_fallthru
        _
      // Predicated region
      $region37: #{gnn_graphpred_forward.1} parent=11 // pred_check
        %p300 = pneg %p180
      $region38: #{gnn_graphpred_forward.1} parent=11 // pred_check_branch
        %302 = sbr.rel (%p300) target = $region40
      $region39: #{gnn_graphpred_forward.1} parent=11 // pred_region
        _
      $region40: #{gnn_graphpred_forward.1} parent=11 // pred_fallthru
        _
      // Predicated region
      $region41: #{gnn_graphpred_forward.1} parent=11 // pred_check
        %p303 = pneg %p201
      $region42: #{gnn_graphpred_forward.1} parent=11 // pred_check_branch
        %305 = sbr.rel (%p303) target = $region44
      $region43: #{gnn_graphpred_forward.1} parent=11 // pred_region
        _
      $region44: #{gnn_graphpred_forward.1} parent=11 // pred_fallthru
        _
      // Predicated region
      $region45: #{gnn_graphpred_forward.1} parent=11 // pred_check
        %p306 = pneg %p222
      $region46: #{gnn_graphpred_forward.1} parent=11 // pred_check_branch
        %308 = sbr.rel (%p306) target = $region48
      $region47: #{gnn_graphpred_forward.1} parent=11 // pred_region
        _
      $region48: #{gnn_graphpred_forward.1} parent=11 // pred_fallthru
        _
      // Predicated region
      $region49: #{gnn_graphpred_forward.1} parent=11 // pred_check
        %p309 = pneg %p243
      $region50: #{gnn_graphpred_forward.1} parent=11 // pred_check_branch
        %311 = sbr.rel (%p309) target = $region52
      $region51: #{gnn_graphpred_forward.1} parent=11 // pred_region
        _
      $region52: #{gnn_graphpred_forward.1} parent=11 // pred_fallthru
        _
    $region12: #{gnn_graphpred_forward.1} parent=5 // pred_fallthru
      _
    %p312 = scmp.lt.s32.totalorder %s16, 2
    // Predicated region
    $region53: #{gnn_graphpred_forward.1} parent=5 // pred_check
      %p313 = pneg %p312
    $region54: #{gnn_graphpred_forward.1} parent=5 // pred_check_branch
      %315 = sbr.rel (%p313) target = $region56
    $region55: #{gnn_graphpred_forward.1} parent=5 // pred_region
      _
    $region56: #{gnn_graphpred_forward.1} parent=5 // pred_fallthru
      _
    %p316 = scmp.le.s32.totalorder 1, %s16
    %p317 = scmp.lt.s32.totalorder %s16, 3
    %p318 = pnand %p316, %p317
    %p319 = pneg %p318
    // Predicated region
    $region57: #{gnn_graphpred_forward.1} parent=5 // pred_check
      _
    $region58: #{gnn_graphpred_forward.1} parent=5 // pred_check_branch
      %321 = sbr.rel (%p318) target = $region60
    $region59: #{gnn_graphpred_forward.1} parent=5 // pred_region
      %s322 = ssub.s32 %s16, 1
      %p323 = pneg %p49
      %p324 = pneg %p46
      %p325 = pneg %p70
      %p326 = pneg %p67
      %p327 = scmp.lt.s32.totalorder %s26, 0
      %s328 = scalar_select %p327, %s26, 0
      %s329 = scalar_lea.vmem %s2, %s328
      %p330 = pneg %p96
      %p331 = pneg %p93
      %p332 = pneg %p117
      %p333 = pneg %p114
      %p334 = pneg %p138
      %p335 = pneg %p135
      %p336 = pneg %p159
      %p337 = pneg %p156
      %p338 = pneg %p180
      %p339 = pneg %p177
      %p340 = pneg %p201
      %p341 = pneg %p198
      %p342 = pneg %p222
      %p343 = pneg %p219
      %p344 = pneg %p243
      %p345 = pneg %p240
      %p346 = pneg %p264
      %p347 = pneg %p261
      %p348 = scmp.lt.s32.totalorder %s26, 0
      %s349 = scalar_select %p348, %s26, 0
      %s350 = scalar_lea.vmem %s2, %s349
      %s352 = smul.u32 %s26, 128
      %p353 = scmp.eq.s32.totalorder %s25, 0
      %p354 = scmp.eq.s32.totalorder %s26, 0
      %p355 = pnand %p353, %p354
      %p356 = pneg %p355
      // Predicated region
      $region61: #{gnn_graphpred_forward.1} parent=59 // pred_check
        _
      $region62: #{gnn_graphpred_forward.1} parent=59 // pred_check_branch
        %358 = sbr.rel (%p355) target = $region64
      $region63: #{gnn_graphpred_forward.1} parent=59 // pred_region
        %359 = vst [vmem:[#allocation3] sm:$0xff] 0.0
        %360 = vst [vmem:[%s10] sm:$0xff] 0.0
      $region64: #{gnn_graphpred_forward.1} parent=59 // pred_fallthru
        _
      // Predicated region
      $region65: #{gnn_graphpred_forward.1} parent=59 // pred_check
        %p361 = pneg %p353
      $region66: #{gnn_graphpred_forward.1} parent=59 // pred_check_branch
        %363 = sbr.rel (%p361) target = $region68
      $region67: #{gnn_graphpred_forward.1} parent=59 // pred_region
        %s364 = sshra.s32 %s352, 3
        %s365 = sand.u32 %s352, 7
        %s366 = smul.addr %s364, 2
        %s367 = scalar_lea.vmem %s1, %s366
        %v368 = vld [vmem:[%s367] sm:$0x3]
        %v369 = vld [vmem:[%s367 + $0x2] sm:$0x3]
        %v370 = vld [vmem:[%s367 + $0x4] sm:$0x3]
        %v371 = vld [vmem:[%s367 + $0x6] sm:$0x3]
        %v372 = vld [vmem:[%s367 + $0x8] sm:$0x3]
        %v373 = vld [vmem:[%s367 + $0xa] sm:$0x3]
        %v374 = vld [vmem:[%s367 + $0xc] sm:$0x3]
        %v375 = vld [vmem:[%s367 + $0xe] sm:$0x3]
        %v376 = vld [vmem:[%s367 + $0x10] sm:$0x3]
        %v377 = vld [vmem:[%s367 + $0x12] sm:$0x3]
        %v378 = vld [vmem:[%s367 + $0x14] sm:$0x3]
        %v379 = vld [vmem:[%s367 + $0x16] sm:$0x3]
        %v380 = vld [vmem:[%s367 + $0x18] sm:$0x3]
        %v381 = vld [vmem:[%s367 + $0x1a] sm:$0x3]
        %v382 = vld [vmem:[%s367 + $0x1c] sm:$0x3]
        %v383 = vld [vmem:[%s367 + $0x1e] sm:$0x3]
        %v384 = vunpack.c.l.s8.bf16 %v368
        %v385 = vunpack.c.l.s8.bf16 %v369
        %v386 = vunpack.c.l.s8.bf16 %v370
        %v387 = vunpack.c.l.s8.bf16 %v371
        %v388 = vunpack.c.l.s8.bf16 %v372
        %v389 = vunpack.c.l.s8.bf16 %v373
        %v390 = vunpack.c.l.s8.bf16 %v374
        %v391 = vunpack.c.l.s8.bf16 %v375
        %v392 = vunpack.c.l.s8.bf16 %v376
        %v393 = vunpack.c.l.s8.bf16 %v377
        %v394 = vunpack.c.l.s8.bf16 %v378
        %v395 = vunpack.c.l.s8.bf16 %v379
        %v396 = vunpack.c.l.s8.bf16 %v380
        %v397 = vunpack.c.l.s8.bf16 %v381
        %v398 = vunpack.c.l.s8.bf16 %v382
        %v399 = vunpack.c.l.s8.bf16 %v383
        %v400 = vld [vmem:[%s0] sm:$0xf]
        %v401 = vld [vmem:[%s0 + $0x4] sm:$0xf]
        %v402 = vld [vmem:[%s0 + $0x8] sm:$0xf]
        %v403 = vld [vmem:[%s0 + $0xc] sm:$0xf]
        %v404 = vld [vmem:[%s0 + $0x10] sm:$0xf]
        %v405 = vld [vmem:[%s0 + $0x14] sm:$0xf]
        %v406 = vld [vmem:[%s0 + $0x18] sm:$0xf]
        %v407 = vld [vmem:[%s0 + $0x1c] sm:$0xf]
        %v408 = vld [vmem:[%s0 + $0x20] sm:$0xf]
        %v409 = vld [vmem:[%s0 + $0x24] sm:$0xf]
        %v410 = vld [vmem:[%s0 + $0x28] sm:$0xf]
        %v411 = vld [vmem:[%s0 + $0x2c] sm:$0xf]
        %v412 = vld [vmem:[%s0 + $0x30] sm:$0xf]
        %v413 = vld [vmem:[%s0 + $0x34] sm:$0xf]
        %v414 = vld [vmem:[%s0 + $0x38] sm:$0xf]
        %v415 = vld [vmem:[%s0 + $0x3c] sm:$0xf]
        %v432 = vunpack.c.l.b16 %v384
        %v433 = vunpack.c.l.b16 %v385
        %v434 = vunpack.c.l.b16 %v386
        %v435 = vunpack.c.l.b16 %v387
        %v436 = vunpack.c.l.b16 %v388
        %v437 = vunpack.c.l.b16 %v389
        %v438 = vunpack.c.l.b16 %v390
        %v439 = vunpack.c.l.b16 %v391
        %v440 = vunpack.c.l.b16 %v392
        %v441 = vunpack.c.l.b16 %v393
        %v442 = vunpack.c.l.b16 %v394
        %v443 = vunpack.c.l.b16 %v395
        %v444 = vunpack.c.l.b16 %v396
        %v445 = vunpack.c.l.b16 %v397
        %v446 = vunpack.c.l.b16 %v398
        %v447 = vunpack.c.l.b16 %v399
        %v448 = vpack.c.b16 %v433, %v432
        %v449 = vpack.c.b16 %v435, %v434
        %v450 = vpack.c.b16 %v437, %v436
        %v451 = vpack.c.b16 %v439, %v438
        %v452 = vpack.c.b16 %v441, %v440
        %v453 = vpack.c.b16 %v443, %v442
        %v454 = vpack.c.b16 %v445, %v444
        %v455 = vpack.c.b16 %v447, %v446
        %v480 = vunpack.c.l.b16 %v400
        %v481 = vunpack.c.l.b16 %v401
        %v482 = vunpack.c.l.b16 %v402
        %v483 = vunpack.c.l.b16 %v403
        %v484 = vunpack.c.l.b16 %v404
        %v485 = vunpack.c.l.b16 %v405
        %v486 = vunpack.c.l.b16 %v406
        %v487 = vunpack.c.l.b16 %v407
        %v488 = vunpack.c.l.b16 %v408
        %v489 = vunpack.c.l.b16 %v409
        %v490 = vunpack.c.l.b16 %v410
        %v491 = vunpack.c.l.b16 %v411
        %v492 = vunpack.c.l.b16 %v412
        %v493 = vunpack.c.l.b16 %v413
        %v494 = vunpack.c.l.b16 %v414
        %v495 = vunpack.c.l.b16 %v415
        %v496 = vpack.c.b16 %v481, %v480
        %v497 = vpack.c.b16 %v483, %v482
        %v498 = vpack.c.b16 %v485, %v484
        %v499 = vpack.c.b16 %v487, %v486
        %v500 = vpack.c.b16 %v489, %v488
        %v501 = vpack.c.b16 %v491, %v490
        %v502 = vpack.c.b16 %v493, %v492
        %v503 = vpack.c.b16 %v495, %v494
        %512 = vmatprep.subr.bf16.mxu0 0
        %513 = vmatpush1.bf16.msra.mxu0 %v503
        %514 = vmatprep.subr.bf16.mxu0 0
        %515 = vmatpush1.bf16.msra.mxu0 %v502
        %516 = vmatprep.subr.bf16.mxu0 0
        %517 = vmatpush1.bf16.msra.mxu0 %v501
        %518 = vmatprep.subr.bf16.mxu0 0
        %519 = vmatpush1.bf16.msra.mxu0 %v500
        %520 = vmatprep.subr.bf16.mxu0 0
        %521 = vmatpush1.bf16.msra.mxu0 %v499
        %522 = vmatprep.subr.bf16.mxu0 0
        %523 = vmatpush1.bf16.msra.mxu0 %v498
        %524 = vmatprep.subr.bf16.mxu0 0
        %525 = vmatpush1.bf16.msra.mxu0 %v497
        %526 = vmatprep.subr.bf16.mxu0 0
        %527 = vmatpush1.bf16.msra.mxu0 %v496
        %528 = vmatprep.subr.bf16.mxu0 0
        %529 = vmatpush2.bf16.msra.mxu0 0
        %530 = vmatprep.subr.bf16.mxu0 0
        %531 = vmatpush2.bf16.msra.mxu0 0
        %532 = vmatprep.subr.bf16.mxu0 0
        %533 = vmatpush2.bf16.msra.mxu0 0
        %534 = vmatprep.subr.bf16.mxu0 0
        %535 = vmatpush2.bf16.msra.mxu0 0
        %536 = vmatprep.subr.bf16.mxu0 0
        %537 = vmatpush2.bf16.msra.mxu0 0
        %538 = vmatprep.subr.bf16.mxu0 0
        %539 = vmatpush2.bf16.msra.mxu0 0
        %540 = vmatprep.subr.bf16.mxu0 0
        %541 = vmatpush2.bf16.msra.mxu0 0
        %542 = vmatprep.subr.bf16.mxu0 0
        %543 = vmatpush2.bf16.msra.mxu0 0
        %544 = vmatprep.mubr.bf16.mxu0 0
        %545 = vmatmul.mubr.bf16.gmra.mxu0 %v448
        %v546 = vpop.f32.mrf.mxu0
        %v547 = vadd.f32 0.0, %v546
        %v548 = vpop.f32.mrf.mxu0
        %v549 = vpop.f32.mrf.mxu0
        %v550 = vadd.f32 0.0, %v549
        %v551 = vpop.f32.mrf.mxu0
        %552 = vmatprep.mubr.bf16.mxu0 0
        %553 = vmatmul.mubr.bf16.gmra.mxu0 %v449
        %v554 = vpop.f32.mrf.mxu0
        %v555 = vadd.f32 0.0, %v554
        %v556 = vpop.f32.mrf.mxu0
        %v557 = vpop.f32.mrf.mxu0
        %v558 = vadd.f32 0.0, %v557
        %v559 = vpop.f32.mrf.mxu0
        %560 = vmatprep.mubr.bf16.mxu0 0
        %561 = vmatmul.mubr.bf16.gmra.mxu0 %v450
        %v562 = vpop.f32.mrf.mxu0
        %v563 = vadd.f32 0.0, %v562
        %v564 = vpop.f32.mrf.mxu0
        %v565 = vpop.f32.mrf.mxu0
        %v566 = vadd.f32 0.0, %v565
        %v567 = vpop.f32.mrf.mxu0
        %568 = vmatprep.mubr.bf16.mxu0 0
        %569 = vmatmul.mubr.bf16.gmra.mxu0 %v451
        %v570 = vpop.f32.mrf.mxu0
        %v571 = vadd.f32 0.0, %v570
        %v572 = vpop.f32.mrf.mxu0
        %v573 = vpop.f32.mrf.mxu0
        %v574 = vadd.f32 0.0, %v573
        %v575 = vpop.f32.mrf.mxu0
        %576 = vmatprep.mubr.bf16.mxu0 0
        %577 = vmatmul.mubr.bf16.gmra.mxu0 %v452
        %v578 = vpop.f32.mrf.mxu0
        %v579 = vadd.f32 0.0, %v578
        %v580 = vpop.f32.mrf.mxu0
        %v581 = vpop.f32.mrf.mxu0
        %v582 = vadd.f32 0.0, %v581
        %v583 = vpop.f32.mrf.mxu0
        %584 = vmatprep.mubr.bf16.mxu0 0
        %585 = vmatmul.mubr.bf16.gmra.mxu0 %v453
        %v586 = vpop.f32.mrf.mxu0
        %v587 = vadd.f32 0.0, %v586
        %v588 = vpop.f32.mrf.mxu0
        %v589 = vpop.f32.mrf.mxu0
        %v590 = vadd.f32 0.0, %v589
        %v591 = vpop.f32.mrf.mxu0
        %592 = vmatprep.mubr.bf16.mxu0 0
        %593 = vmatmul.mubr.bf16.gmra.mxu0 %v454
        %v594 = vpop.f32.mrf.mxu0
        %v595 = vadd.f32 0.0, %v594
        %v596 = vpop.f32.mrf.mxu0
        %v597 = vpop.f32.mrf.mxu0
        %v598 = vadd.f32 0.0, %v597
        %v599 = vpop.f32.mrf.mxu0
        %600 = vmatprep.mubr.bf16.mxu0 0
        %601 = vmatmul.mubr.bf16.gmra.mxu0 %v455
        %v602 = vpop.f32.mrf.mxu0
        %v603 = vadd.f32 0.0, %v602
        %v604 = vpop.f32.mrf.mxu0
        %v605 = vpop.f32.mrf.mxu0
        %v606 = vadd.f32 0.0, %v605
        %v607 = vpop.f32.mrf.mxu0
        %608 = vdwg.mxu0
        %v609 = vpack.c.bf16 %v550, %v547
        %v610 = vpack.c.bf16 %v558, %v555
        %v611 = vpack.c.bf16 %v566, %v563
        %v612 = vpack.c.bf16 %v574, %v571
        %v613 = vpack.c.bf16 %v582, %v579
        %v614 = vpack.c.bf16 %v590, %v587
        %v615 = vpack.c.bf16 %v598, %v595
        %v616 = vpack.c.bf16 %v606, %v603
        %v617 = vld [vmem:[%s4] sm:$0xf]
        %v618 = vld [vmem:[%s4 + $0x4] sm:$0xf]
        %v619 = vld [vmem:[%s4 + $0x8] sm:$0xf]
        %v620 = vld [vmem:[%s4 + $0xc] sm:$0xf]
        %v621 = vld [vmem:[%s4 + $0x10] sm:$0xf]
        %v622 = vld [vmem:[%s4 + $0x14] sm:$0xf]
        %v623 = vld [vmem:[%s4 + $0x18] sm:$0xf]
        %v624 = vld [vmem:[%s4 + $0x1c] sm:$0xf]
        %v625 = vld [vmem:[%s4 + $0x20] sm:$0xf]
        %v626 = vld [vmem:[%s4 + $0x24] sm:$0xf]
        %v627 = vld [vmem:[%s4 + $0x28] sm:$0xf]
        %v628 = vld [vmem:[%s4 + $0x2c] sm:$0xf]
        %v629 = vld [vmem:[%s4 + $0x30] sm:$0xf]
        %v630 = vld [vmem:[%s4 + $0x34] sm:$0xf]
        %v631 = vld [vmem:[%s4 + $0x38] sm:$0xf]
        %v632 = vld [vmem:[%s4 + $0x3c] sm:$0xf]
        %v633 = vld [vmem:[%s5] sm:$0x1]
        %v635 = vlaneseq
        %v636 = vshrl.u32 %v635, 7
        %v637 = vsub.s32 0, %v636
        %v638 = vrot.slane %v633, %v637
        %v656 = vunpack.c.l.b16 %v617
        %v657 = vunpack.c.l.b16 %v618
        %v658 = vunpack.c.l.b16 %v619
        %v659 = vunpack.c.l.b16 %v620
        %v660 = vunpack.c.l.b16 %v621
        %v661 = vunpack.c.l.b16 %v622
        %v662 = vunpack.c.l.b16 %v623
        %v663 = vunpack.c.l.b16 %v624
        %v664 = vunpack.c.l.b16 %v625
        %v665 = vunpack.c.l.b16 %v626
        %v666 = vunpack.c.l.b16 %v627
        %v667 = vunpack.c.l.b16 %v628
        %v668 = vunpack.c.l.b16 %v629
        %v669 = vunpack.c.l.b16 %v630
        %v670 = vunpack.c.l.b16 %v631
        %v671 = vunpack.c.l.b16 %v632
        %v672 = vpack.c.b16 %v657, %v656
        %v673 = vpack.c.b16 %v659, %v658
        %v674 = vpack.c.b16 %v661, %v660
        %v675 = vpack.c.b16 %v663, %v662
        %v676 = vpack.c.b16 %v665, %v664
        %v677 = vpack.c.b16 %v667, %v666
        %v678 = vpack.c.b16 %v669, %v668
        %v679 = vpack.c.b16 %v671, %v670
        %688 = vmatprep.subr.bf16.mxu0 0
        %689 = vmatpush1.bf16.msra.mxu0 %v679
        %690 = vmatprep.subr.bf16.mxu0 0
        %691 = vmatpush1.bf16.msra.mxu0 %v678
        %692 = vmatprep.subr.bf16.mxu0 0
        %693 = vmatpush1.bf16.msra.mxu0 %v677
        %694 = vmatprep.subr.bf16.mxu0 0
        %695 = vmatpush1.bf16.msra.mxu0 %v676
        %696 = vmatprep.subr.bf16.mxu0 0
        %697 = vmatpush1.bf16.msra.mxu0 %v675
        %698 = vmatprep.subr.bf16.mxu0 0
        %699 = vmatpush1.bf16.msra.mxu0 %v674
        %700 = vmatprep.subr.bf16.mxu0 0
        %701 = vmatpush1.bf16.msra.mxu0 %v673
        %702 = vmatprep.subr.bf16.mxu0 0
        %703 = vmatpush1.bf16.msra.mxu0 %v672
        %704 = vmatprep.subr.bf16.mxu0 0
        %705 = vmatpush2.bf16.msra.mxu0 0
        %706 = vmatprep.subr.bf16.mxu0 0
        %707 = vmatpush2.bf16.msra.mxu0 0
        %708 = vmatprep.subr.bf16.mxu0 0
        %709 = vmatpush2.bf16.msra.mxu0 0
        %710 = vmatprep.subr.bf16.mxu0 0
        %711 = vmatpush2.bf16.msra.mxu0 0
        %712 = vmatprep.subr.bf16.mxu0 0
        %713 = vmatpush2.bf16.msra.mxu0 0
        %714 = vmatprep.subr.bf16.mxu0 0
        %715 = vmatpush2.bf16.msra.mxu0 0
        %716 = vmatprep.subr.bf16.mxu0 0
        %717 = vmatpush2.bf16.msra.mxu0 0
        %718 = vmatprep.subr.bf16.mxu0 0
        %719 = vmatpush2.bf16.msra.mxu0 0
        %720 = vmatprep.mubr.bf16.mxu0 0
        %721 = vmatmul.mubr.bf16.gmra.mxu0 %v609
        %v722 = vpop.f32.mrf.mxu0
        %v723 = vadd.f32 %v638, %v722
        %v724 = vpop.f32.mrf.mxu0
        %v725 = vpop.f32.mrf.mxu0
        %v726 = vadd.f32 %v638, %v725
        %v727 = vpop.f32.mrf.mxu0
        %728 = vmatprep.mubr.bf16.mxu0 0
        %729 = vmatmul.mubr.bf16.gmra.mxu0 %v610
        %v730 = vpop.f32.mrf.mxu0
        %v731 = vadd.f32 %v638, %v730
        %v732 = vpop.f32.mrf.mxu0
        %v733 = vpop.f32.mrf.mxu0
        %v734 = vadd.f32 %v638, %v733
        %v735 = vpop.f32.mrf.mxu0
        %736 = vmatprep.mubr.bf16.mxu0 0
        %737 = vmatmul.mubr.bf16.gmra.mxu0 %v611
        %v738 = vpop.f32.mrf.mxu0
        %v739 = vadd.f32 %v638, %v738
        %v740 = vpop.f32.mrf.mxu0
        %v741 = vpop.f32.mrf.mxu0
        %v742 = vadd.f32 %v638, %v741
        %v743 = vpop.f32.mrf.mxu0
        %744 = vmatprep.mubr.bf16.mxu0 0
        %745 = vmatmul.mubr.bf16.gmra.mxu0 %v612
        %v746 = vpop.f32.mrf.mxu0
        %v747 = vadd.f32 %v638, %v746
        %v748 = vpop.f32.mrf.mxu0
        %v749 = vpop.f32.mrf.mxu0
        %v750 = vadd.f32 %v638, %v749
        %v751 = vpop.f32.mrf.mxu0
        %752 = vmatprep.mubr.bf16.mxu0 0
        %753 = vmatmul.mubr.bf16.gmra.mxu0 %v613
        %v754 = vpop.f32.mrf.mxu0
        %v755 = vadd.f32 %v638, %v754
        %v756 = vpop.f32.mrf.mxu0
        %v757 = vpop.f32.mrf.mxu0
        %v758 = vadd.f32 %v638, %v757
        %v759 = vpop.f32.mrf.mxu0
        %760 = vmatprep.mubr.bf16.mxu0 0
        %761 = vmatmul.mubr.bf16.gmra.mxu0 %v614
        %v762 = vpop.f32.mrf.mxu0
        %v763 = vadd.f32 %v638, %v762
        %v764 = vpop.f32.mrf.mxu0
        %v765 = vpop.f32.mrf.mxu0
        %v766 = vadd.f32 %v638, %v765
        %v767 = vpop.f32.mrf.mxu0
        %768 = vmatprep.mubr.bf16.mxu0 0
        %769 = vmatmul.mubr.bf16.gmra.mxu0 %v615
        %v770 = vpop.f32.mrf.mxu0
        %v771 = vadd.f32 %v638, %v770
        %v772 = vpop.f32.mrf.mxu0
        %v773 = vpop.f32.mrf.mxu0
        %v774 = vadd.f32 %v638, %v773
        %v775 = vpop.f32.mrf.mxu0
        %776 = vmatprep.mubr.bf16.mxu0 0
        %777 = vmatmul.mubr.bf16.gmra.mxu0 %v616
        %v778 = vpop.f32.mrf.mxu0
        %v779 = vadd.f32 %v638, %v778
        %v780 = vpop.f32.mrf.mxu0
        %v781 = vpop.f32.mrf.mxu0
        %v782 = vadd.f32 %v638, %v781
        %v783 = vpop.f32.mrf.mxu0
        %784 = vdwg.mxu0
        %v785 = vmax.f32 %v723, 0.0
        %v786 = vmax.f32 %v726, 0.0
        %v787 = vmax.f32 %v731, 0.0
        %v788 = vmax.f32 %v734, 0.0
        %v789 = vmax.f32 %v739, 0.0
        %v790 = vmax.f32 %v742, 0.0
        %v791 = vmax.f32 %v747, 0.0
        %v792 = vmax.f32 %v750, 0.0
        %v793 = vmax.f32 %v755, 0.0
        %v794 = vmax.f32 %v758, 0.0
        %v795 = vmax.f32 %v763, 0.0
        %v796 = vmax.f32 %v766, 0.0
        %v797 = vmax.f32 %v771, 0.0
        %v798 = vmax.f32 %v774, 0.0
        %v799 = vmax.f32 %v779, 0.0
        %v800 = vmax.f32 %v782, 0.0
        %v801 = vpack.c.bf16 %v786, %v785
        %v802 = vpack.c.bf16 %v788, %v787
        %v803 = vpack.c.bf16 %v790, %v789
        %v804 = vpack.c.bf16 %v792, %v791
        %v805 = vpack.c.bf16 %v794, %v793
        %v806 = vpack.c.bf16 %v796, %v795
        %v807 = vpack.c.bf16 %v798, %v797
        %v808 = vpack.c.bf16 %v800, %v799
        %v817 = vunpack.c.l.b16 %v801
        %v818 = vunpack.c.h.b16 %v801
        %v819 = vunpack.c.l.b16 %v802
        %v820 = vunpack.c.h.b16 %v802
        %v821 = vunpack.c.l.b16 %v803
        %v822 = vunpack.c.h.b16 %v803
        %v823 = vunpack.c.l.b16 %v804
        %v824 = vunpack.c.h.b16 %v804
        %v825 = vunpack.c.l.b16 %v805
        %v826 = vunpack.c.h.b16 %v805
        %v827 = vunpack.c.l.b16 %v806
        %v828 = vunpack.c.h.b16 %v806
        %v829 = vunpack.c.l.b16 %v807
        %v830 = vunpack.c.h.b16 %v807
        %v831 = vunpack.c.l.b16 %v808
        %v832 = vunpack.c.h.b16 %v808
        %v833 = vpack.c.b16 %v817, %v817
        %v834 = vpack.c.b16 %v818, %v818
        %v835 = vpack.c.b16 %v819, %v819
        %v836 = vpack.c.b16 %v820, %v820
        %v837 = vpack.c.b16 %v821, %v821
        %v838 = vpack.c.b16 %v822, %v822
        %v839 = vpack.c.b16 %v823, %v823
        %v840 = vpack.c.b16 %v824, %v824
        %v841 = vpack.c.b16 %v825, %v825
        %v842 = vpack.c.b16 %v826, %v826
        %v843 = vpack.c.b16 %v827, %v827
        %v844 = vpack.c.b16 %v828, %v828
        %v845 = vpack.c.b16 %v829, %v829
        %v846 = vpack.c.b16 %v830, %v830
        %v847 = vpack.c.b16 %v831, %v831
        %v848 = vpack.c.b16 %v832, %v832
        %s865 = smul.addr %s364, 4
        %s866 = scalar_lea.vmem [#allocation2], %s865
        %867 = vst [vmem:[%s866] sm:$0xf] %v833
        %868 = vst [vmem:[%s866 + $0x4] sm:$0xf] %v834
        %869 = vst [vmem:[%s866 + $0x8] sm:$0xf] %v835
        %870 = vst [vmem:[%s866 + $0xc] sm:$0xf] %v836
        %871 = vst [vmem:[%s866 + $0x10] sm:$0xf] %v837
        %872 = vst [vmem:[%s866 + $0x14] sm:$0xf] %v838
        %873 = vst [vmem:[%s866 + $0x18] sm:$0xf] %v839
        %874 = vst [vmem:[%s866 + $0x1c] sm:$0xf] %v840
        %875 = vst [vmem:[%s866 + $0x20] sm:$0xf] %v841
        %876 = vst [vmem:[%s866 + $0x24] sm:$0xf] %v842
        %877 = vst [vmem:[%s866 + $0x28] sm:$0xf] %v843
        %878 = vst [vmem:[%s866 + $0x2c] sm:$0xf] %v844
        %879 = vst [vmem:[%s866 + $0x30] sm:$0xf] %v845
        %880 = vst [vmem:[%s866 + $0x34] sm:$0xf] %v846
        %881 = vst [vmem:[%s866 + $0x38] sm:$0xf] %v847
        %882 = vst [vmem:[%s866 + $0x3c] sm:$0xf] %v848
      $region68: #{gnn_graphpred_forward.1} parent=59 // pred_fallthru
        _
      %p883 = scmp.eq.s32.totalorder %s25, 1
      // Predicated region
      $region69: #{gnn_graphpred_forward.1} parent=59 // pred_check
        %p884 = pneg %p883
      $region70: #{gnn_graphpred_forward.1} parent=59 // pred_check_branch
        %886 = sbr.rel (%p884) target = $region72
      $region71: #{gnn_graphpred_forward.1} parent=59 // pred_region
        %s887 = sshra.s32 %s352, 3
        %s888 = sand.u32 %s352, 7
        %s889 = smul.addr %s887, 2
        %s890 = scalar_lea.vmem %s1, %s889
        %v891 = vld [vmem:[%s890] sm:$0x3]
        %v892 = vld [vmem:[%s890 + $0x2] sm:$0x3]
        %v893 = vld [vmem:[%s890 + $0x4] sm:$0x3]
        %v894 = vld [vmem:[%s890 + $0x6] sm:$0x3]
        %v895 = vld [vmem:[%s890 + $0x8] sm:$0x3]
        %v896 = vld [vmem:[%s890 + $0xa] sm:$0x3]
        %v897 = vld [vmem:[%s890 + $0xc] sm:$0x3]
        %v898 = vld [vmem:[%s890 + $0xe] sm:$0x3]
        %v899 = vld [vmem:[%s890 + $0x10] sm:$0x3]
        %v900 = vld [vmem:[%s890 + $0x12] sm:$0x3]
        %v901 = vld [vmem:[%s890 + $0x14] sm:$0x3]
        %v902 = vld [vmem:[%s890 + $0x16] sm:$0x3]
        %v903 = vld [vmem:[%s890 + $0x18] sm:$0x3]
        %v904 = vld [vmem:[%s890 + $0x1a] sm:$0x3]
        %v905 = vld [vmem:[%s890 + $0x1c] sm:$0x3]
        %v906 = vld [vmem:[%s890 + $0x1e] sm:$0x3]
        %v907 = vunpack.c.l.s8.bf16 %v891
        %v908 = vunpack.c.l.s8.bf16 %v892
        %v909 = vunpack.c.l.s8.bf16 %v893
        %v910 = vunpack.c.l.s8.bf16 %v894
        %v911 = vunpack.c.l.s8.bf16 %v895
        %v912 = vunpack.c.l.s8.bf16 %v896
        %v913 = vunpack.c.l.s8.bf16 %v897
        %v914 = vunpack.c.l.s8.bf16 %v898
        %v915 = vunpack.c.l.s8.bf16 %v899
        %v916 = vunpack.c.l.s8.bf16 %v900
        %v917 = vunpack.c.l.s8.bf16 %v901
        %v918 = vunpack.c.l.s8.bf16 %v902
        %v919 = vunpack.c.l.s8.bf16 %v903
        %v920 = vunpack.c.l.s8.bf16 %v904
        %v921 = vunpack.c.l.s8.bf16 %v905
        %v922 = vunpack.c.l.s8.bf16 %v906
        %v923 = vld [vmem:[#allocation2] sm:$0xf]
        %v924 = vld [vmem:[#allocation2 + $0x4] sm:$0xf]
        %v925 = vld [vmem:[#allocation2 + $0x8] sm:$0xf]
        %v926 = vld [vmem:[#allocation2 + $0xc] sm:$0xf]
        %v927 = vld [vmem:[#allocation2 + $0x10] sm:$0xf]
        %v928 = vld [vmem:[#allocation2 + $0x14] sm:$0xf]
        %v929 = vld [vmem:[#allocation2 + $0x18] sm:$0xf]
        %v930 = vld [vmem:[#allocation2 + $0x1c] sm:$0xf]
        %v931 = vld [vmem:[#allocation2 + $0x20] sm:$0xf]
        %v932 = vld [vmem:[#allocation2 + $0x24] sm:$0xf]
        %v933 = vld [vmem:[#allocation2 + $0x28] sm:$0xf]
        %v934 = vld [vmem:[#allocation2 + $0x2c] sm:$0xf]
        %v935 = vld [vmem:[#allocation2 + $0x30] sm:$0xf]
        %v936 = vld [vmem:[#allocation2 + $0x34] sm:$0xf]
        %v937 = vld [vmem:[#allocation2 + $0x38] sm:$0xf]
        %v938 = vld [vmem:[#allocation2 + $0x3c] sm:$0xf]
        %v955 = vunpack.c.l.b16 %v907
        %v956 = vunpack.c.l.b16 %v908
        %v957 = vunpack.c.l.b16 %v909
        %v958 = vunpack.c.l.b16 %v910
        %v959 = vunpack.c.l.b16 %v911
        %v960 = vunpack.c.l.b16 %v912
        %v961 = vunpack.c.l.b16 %v913
        %v962 = vunpack.c.l.b16 %v914
        %v963 = vunpack.c.l.b16 %v915
        %v964 = vunpack.c.l.b16 %v916
        %v965 = vunpack.c.l.b16 %v917
        %v966 = vunpack.c.l.b16 %v918
        %v967 = vunpack.c.l.b16 %v919
        %v968 = vunpack.c.l.b16 %v920
        %v969 = vunpack.c.l.b16 %v921
        %v970 = vunpack.c.l.b16 %v922
        %v971 = vpack.c.b16 %v956, %v955
        %v972 = vpack.c.b16 %v958, %v957
        %v973 = vpack.c.b16 %v960, %v959
        %v974 = vpack.c.b16 %v962, %v961
        %v975 = vpack.c.b16 %v964, %v963
        %v976 = vpack.c.b16 %v966, %v965
        %v977 = vpack.c.b16 %v968, %v967
        %v978 = vpack.c.b16 %v970, %v969
        %v1003 = vunpack.c.l.b16 %v923
        %v1004 = vunpack.c.l.b16 %v924
        %v1005 = vunpack.c.l.b16 %v925
        %v1006 = vunpack.c.l.b16 %v926
        %v1007 = vunpack.c.l.b16 %v927
        %v1008 = vunpack.c.l.b16 %v928
        %v1009 = vunpack.c.l.b16 %v929
        %v1010 = vunpack.c.l.b16 %v930
        %v1011 = vunpack.c.l.b16 %v931
        %v1012 = vunpack.c.l.b16 %v932
        %v1013 = vunpack.c.l.b16 %v933
        %v1014 = vunpack.c.l.b16 %v934
        %v1015 = vunpack.c.l.b16 %v935
        %v1016 = vunpack.c.l.b16 %v936
        %v1017 = vunpack.c.l.b16 %v937
        %v1018 = vunpack.c.l.b16 %v938
        %v1019 = vpack.c.b16 %v1004, %v1003
        %v1020 = vpack.c.b16 %v1006, %v1005
        %v1021 = vpack.c.b16 %v1008, %v1007
        %v1022 = vpack.c.b16 %v1010, %v1009
        %v1023 = vpack.c.b16 %v1012, %v1011
        %v1024 = vpack.c.b16 %v1014, %v1013
        %v1025 = vpack.c.b16 %v1016, %v1015
        %v1026 = vpack.c.b16 %v1018, %v1017
        %1035 = vmatprep.subr.bf16.mxu0 0
        %1036 = vmatpush1.bf16.msra.mxu0 %v1026
        %1037 = vmatprep.subr.bf16.mxu0 0
        %1038 = vmatpush1.bf16.msra.mxu0 %v1025
        %1039 = vmatprep.subr.bf16.mxu0 0
        %1040 = vmatpush1.bf16.msra.mxu0 %v1024
        %1041 = vmatprep.subr.bf16.mxu0 0
        %1042 = vmatpush1.bf16.msra.mxu0 %v1023
        %1043 = vmatprep.subr.bf16.mxu0 0
        %1044 = vmatpush1.bf16.msra.mxu0 %v1022
        %1045 = vmatprep.subr.bf16.mxu0 0
        %1046 = vmatpush1.bf16.msra.mxu0 %v1021
        %1047 = vmatprep.subr.bf16.mxu0 0
        %1048 = vmatpush1.bf16.msra.mxu0 %v1020
        %1049 = vmatprep.subr.bf16.mxu0 0
        %1050 = vmatpush1.bf16.msra.mxu0 %v1019
        %1051 = vmatprep.subr.bf16.mxu0 0
        %1052 = vmatpush2.bf16.msra.mxu0 0
        %1053 = vmatprep.subr.bf16.mxu0 0
        %1054 = vmatpush2.bf16.msra.mxu0 0
        %1055 = vmatprep.subr.bf16.mxu0 0
        %1056 = vmatpush2.bf16.msra.mxu0 0
        %1057 = vmatprep.subr.bf16.mxu0 0
        %1058 = vmatpush2.bf16.msra.mxu0 0
        %1059 = vmatprep.subr.bf16.mxu0 0
        %1060 = vmatpush2.bf16.msra.mxu0 0
        %1061 = vmatprep.subr.bf16.mxu0 0
        %1062 = vmatpush2.bf16.msra.mxu0 0
        %1063 = vmatprep.subr.bf16.mxu0 0
        %1064 = vmatpush2.bf16.msra.mxu0 0
        %1065 = vmatprep.subr.bf16.mxu0 0
        %1066 = vmatpush2.bf16.msra.mxu0 0
        %1067 = vmatprep.mubr.bf16.mxu0 0
        %1068 = vmatmul.mubr.bf16.gmra.mxu0 %v971
        %v1069 = vpop.f32.mrf.mxu0
        %v1070 = vadd.f32 0.0, %v1069
        %v1071 = vpop.f32.mrf.mxu0
        %v1072 = vpop.f32.mrf.mxu0
        %v1073 = vadd.f32 0.0, %v1072
        %v1074 = vpop.f32.mrf.mxu0
        %1075 = vmatprep.mubr.bf16.mxu0 0
        %1076 = vmatmul.mubr.bf16.gmra.mxu0 %v972
        %v1077 = vpop.f32.mrf.mxu0
        %v1078 = vadd.f32 0.0, %v1077
        %v1079 = vpop.f32.mrf.mxu0
        %v1080 = vpop.f32.mrf.mxu0
        %v1081 = vadd.f32 0.0, %v1080
        %v1082 = vpop.f32.mrf.mxu0
        %1083 = vmatprep.mubr.bf16.mxu0 0
        %1084 = vmatmul.mubr.bf16.gmra.mxu0 %v973
        %v1085 = vpop.f32.mrf.mxu0
        %v1086 = vadd.f32 0.0, %v1085
        %v1087 = vpop.f32.mrf.mxu0
        %v1088 = vpop.f32.mrf.mxu0
        %v1089 = vadd.f32 0.0, %v1088
        %v1090 = vpop.f32.mrf.mxu0
        %1091 = vmatprep.mubr.bf16.mxu0 0
        %1092 = vmatmul.mubr.bf16.gmra.mxu0 %v974
        %v1093 = vpop.f32.mrf.mxu0
        %v1094 = vadd.f32 0.0, %v1093
        %v1095 = vpop.f32.mrf.mxu0
        %v1096 = vpop.f32.mrf.mxu0
        %v1097 = vadd.f32 0.0, %v1096
        %v1098 = vpop.f32.mrf.mxu0
        %1099 = vmatprep.mubr.bf16.mxu0 0
        %1100 = vmatmul.mubr.bf16.gmra.mxu0 %v975
        %v1101 = vpop.f32.mrf.mxu0
        %v1102 = vadd.f32 0.0, %v1101
        %v1103 = vpop.f32.mrf.mxu0
        %v1104 = vpop.f32.mrf.mxu0
        %v1105 = vadd.f32 0.0, %v1104
        %v1106 = vpop.f32.mrf.mxu0
        %1107 = vmatprep.mubr.bf16.mxu0 0
        %1108 = vmatmul.mubr.bf16.gmra.mxu0 %v976
        %v1109 = vpop.f32.mrf.mxu0
        %v1110 = vadd.f32 0.0, %v1109
        %v1111 = vpop.f32.mrf.mxu0
        %v1112 = vpop.f32.mrf.mxu0
        %v1113 = vadd.f32 0.0, %v1112
        %v1114 = vpop.f32.mrf.mxu0
        %1115 = vmatprep.mubr.bf16.mxu0 0
        %1116 = vmatmul.mubr.bf16.gmra.mxu0 %v977
        %v1117 = vpop.f32.mrf.mxu0
        %v1118 = vadd.f32 0.0, %v1117
        %v1119 = vpop.f32.mrf.mxu0
        %v1120 = vpop.f32.mrf.mxu0
        %v1121 = vadd.f32 0.0, %v1120
        %v1122 = vpop.f32.mrf.mxu0
        %1123 = vmatprep.mubr.bf16.mxu0 0
        %1124 = vmatmul.mubr.bf16.gmra.mxu0 %v978
        %v1125 = vpop.f32.mrf.mxu0
        %v1126 = vadd.f32 0.0, %v1125
        %v1127 = vpop.f32.mrf.mxu0
        %v1128 = vpop.f32.mrf.mxu0
        %v1129 = vadd.f32 0.0, %v1128
        %v1130 = vpop.f32.mrf.mxu0
        %1131 = vdwg.mxu0
        %v1132 = vpack.c.bf16 %v1073, %v1070
        %v1133 = vpack.c.bf16 %v1081, %v1078
        %v1134 = vpack.c.bf16 %v1089, %v1086
        %v1135 = vpack.c.bf16 %v1097, %v1094
        %v1136 = vpack.c.bf16 %v1105, %v1102
        %v1137 = vpack.c.bf16 %v1113, %v1110
        %v1138 = vpack.c.bf16 %v1121, %v1118
        %v1139 = vpack.c.bf16 %v1129, %v1126
        %v1140 = vld [vmem:[%s6] sm:$0xf]
        %v1141 = vld [vmem:[%s6 + $0x4] sm:$0xf]
        %v1142 = vld [vmem:[%s6 + $0x8] sm:$0xf]
        %v1143 = vld [vmem:[%s6 + $0xc] sm:$0xf]
        %v1144 = vld [vmem:[%s6 + $0x10] sm:$0xf]
        %v1145 = vld [vmem:[%s6 + $0x14] sm:$0xf]
        %v1146 = vld [vmem:[%s6 + $0x18] sm:$0xf]
        %v1147 = vld [vmem:[%s6 + $0x1c] sm:$0xf]
        %v1148 = vld [vmem:[%s6 + $0x20] sm:$0xf]
        %v1149 = vld [vmem:[%s6 + $0x24] sm:$0xf]
        %v1150 = vld [vmem:[%s6 + $0x28] sm:$0xf]
        %v1151 = vld [vmem:[%s6 + $0x2c] sm:$0xf]
        %v1152 = vld [vmem:[%s6 + $0x30] sm:$0xf]
        %v1153 = vld [vmem:[%s6 + $0x34] sm:$0xf]
        %v1154 = vld [vmem:[%s6 + $0x38] sm:$0xf]
        %v1155 = vld [vmem:[%s6 + $0x3c] sm:$0xf]
        %v1156 = vld [vmem:[%s7] sm:$0x1]
        %v1158 = vlaneseq
        %v1159 = vshrl.u32 %v1158, 7
        %v1160 = vsub.s32 0, %v1159
        %v1161 = vrot.slane %v1156, %v1160
        %v1179 = vunpack.c.l.b16 %v1140
        %v1180 = vunpack.c.l.b16 %v1141
        %v1181 = vunpack.c.l.b16 %v1142
        %v1182 = vunpack.c.l.b16 %v1143
        %v1183 = vunpack.c.l.b16 %v1144
        %v1184 = vunpack.c.l.b16 %v1145
        %v1185 = vunpack.c.l.b16 %v1146
        %v1186 = vunpack.c.l.b16 %v1147
        %v1187 = vunpack.c.l.b16 %v1148
        %v1188 = vunpack.c.l.b16 %v1149
        %v1189 = vunpack.c.l.b16 %v1150
        %v1190 = vunpack.c.l.b16 %v1151
        %v1191 = vunpack.c.l.b16 %v1152
        %v1192 = vunpack.c.l.b16 %v1153
        %v1193 = vunpack.c.l.b16 %v1154
        %v1194 = vunpack.c.l.b16 %v1155
        %v1195 = vpack.c.b16 %v1180, %v1179
        %v1196 = vpack.c.b16 %v1182, %v1181
        %v1197 = vpack.c.b16 %v1184, %v1183
        %v1198 = vpack.c.b16 %v1186, %v1185
        %v1199 = vpack.c.b16 %v1188, %v1187
        %v1200 = vpack.c.b16 %v1190, %v1189
        %v1201 = vpack.c.b16 %v1192, %v1191
        %v1202 = vpack.c.b16 %v1194, %v1193
        %1211 = vmatprep.subr.bf16.mxu0 0
        %1212 = vmatpush1.bf16.msra.mxu0 %v1202
        %1213 = vmatprep.subr.bf16.mxu0 0
        %1214 = vmatpush1.bf16.msra.mxu0 %v1201
        %1215 = vmatprep.subr.bf16.mxu0 0
        %1216 = vmatpush1.bf16.msra.mxu0 %v1200
        %1217 = vmatprep.subr.bf16.mxu0 0
        %1218 = vmatpush1.bf16.msra.mxu0 %v1199
        %1219 = vmatprep.subr.bf16.mxu0 0
        %1220 = vmatpush1.bf16.msra.mxu0 %v1198
        %1221 = vmatprep.subr.bf16.mxu0 0
        %1222 = vmatpush1.bf16.msra.mxu0 %v1197
        %1223 = vmatprep.subr.bf16.mxu0 0
        %1224 = vmatpush1.bf16.msra.mxu0 %v1196
        %1225 = vmatprep.subr.bf16.mxu0 0
        %1226 = vmatpush1.bf16.msra.mxu0 %v1195
        %1227 = vmatprep.subr.bf16.mxu0 0
        %1228 = vmatpush2.bf16.msra.mxu0 0
        %1229 = vmatprep.subr.bf16.mxu0 0
        %1230 = vmatpush2.bf16.msra.mxu0 0
        %1231 = vmatprep.subr.bf16.mxu0 0
        %1232 = vmatpush2.bf16.msra.mxu0 0
        %1233 = vmatprep.subr.bf16.mxu0 0
        %1234 = vmatpush2.bf16.msra.mxu0 0
        %1235 = vmatprep.subr.bf16.mxu0 0
        %1236 = vmatpush2.bf16.msra.mxu0 0
        %1237 = vmatprep.subr.bf16.mxu0 0
        %1238 = vmatpush2.bf16.msra.mxu0 0
        %1239 = vmatprep.subr.bf16.mxu0 0
        %1240 = vmatpush2.bf16.msra.mxu0 0
        %1241 = vmatprep.subr.bf16.mxu0 0
        %1242 = vmatpush2.bf16.msra.mxu0 0
        %1243 = vmatprep.mubr.bf16.mxu0 0
        %1244 = vmatmul.mubr.bf16.gmra.mxu0 %v1132
        %v1245 = vpop.f32.mrf.mxu0
        %v1246 = vadd.f32 %v1161, %v1245
        %v1247 = vpop.f32.mrf.mxu0
        %v1248 = vpop.f32.mrf.mxu0
        %v1249 = vadd.f32 %v1161, %v1248
        %v1250 = vpop.f32.mrf.mxu0
        %1251 = vmatprep.mubr.bf16.mxu0 0
        %1252 = vmatmul.mubr.bf16.gmra.mxu0 %v1133
        %v1253 = vpop.f32.mrf.mxu0
        %v1254 = vadd.f32 %v1161, %v1253
        %v1255 = vpop.f32.mrf.mxu0
        %v1256 = vpop.f32.mrf.mxu0
        %v1257 = vadd.f32 %v1161, %v1256
        %v1258 = vpop.f32.mrf.mxu0
        %1259 = vmatprep.mubr.bf16.mxu0 0
        %1260 = vmatmul.mubr.bf16.gmra.mxu0 %v1134
        %v1261 = vpop.f32.mrf.mxu0
        %v1262 = vadd.f32 %v1161, %v1261
        %v1263 = vpop.f32.mrf.mxu0
        %v1264 = vpop.f32.mrf.mxu0
        %v1265 = vadd.f32 %v1161, %v1264
        %v1266 = vpop.f32.mrf.mxu0
        %1267 = vmatprep.mubr.bf16.mxu0 0
        %1268 = vmatmul.mubr.bf16.gmra.mxu0 %v1135
        %v1269 = vpop.f32.mrf.mxu0
        %v1270 = vadd.f32 %v1161, %v1269
        %v1271 = vpop.f32.mrf.mxu0
        %v1272 = vpop.f32.mrf.mxu0
        %v1273 = vadd.f32 %v1161, %v1272
        %v1274 = vpop.f32.mrf.mxu0
        %1275 = vmatprep.mubr.bf16.mxu0 0
        %1276 = vmatmul.mubr.bf16.gmra.mxu0 %v1136
        %v1277 = vpop.f32.mrf.mxu0
        %v1278 = vadd.f32 %v1161, %v1277
        %v1279 = vpop.f32.mrf.mxu0
        %v1280 = vpop.f32.mrf.mxu0
        %v1281 = vadd.f32 %v1161, %v1280
        %v1282 = vpop.f32.mrf.mxu0
        %1283 = vmatprep.mubr.bf16.mxu0 0
        %1284 = vmatmul.mubr.bf16.gmra.mxu0 %v1137
        %v1285 = vpop.f32.mrf.mxu0
        %v1286 = vadd.f32 %v1161, %v1285
        %v1287 = vpop.f32.mrf.mxu0
        %v1288 = vpop.f32.mrf.mxu0
        %v1289 = vadd.f32 %v1161, %v1288
        %v1290 = vpop.f32.mrf.mxu0
        %1291 = vmatprep.mubr.bf16.mxu0 0
        %1292 = vmatmul.mubr.bf16.gmra.mxu0 %v1138
        %v1293 = vpop.f32.mrf.mxu0
        %v1294 = vadd.f32 %v1161, %v1293
        %v1295 = vpop.f32.mrf.mxu0
        %v1296 = vpop.f32.mrf.mxu0
        %v1297 = vadd.f32 %v1161, %v1296
        %v1298 = vpop.f32.mrf.mxu0
        %1299 = vmatprep.mubr.bf16.mxu0 0
        %1300 = vmatmul.mubr.bf16.gmra.mxu0 %v1139
        %v1301 = vpop.f32.mrf.mxu0
        %v1302 = vadd.f32 %v1161, %v1301
        %v1303 = vpop.f32.mrf.mxu0
        %v1304 = vpop.f32.mrf.mxu0
        %v1305 = vadd.f32 %v1161, %v1304
        %v1306 = vpop.f32.mrf.mxu0
        %1307 = vdwg.mxu0
        %v1308 = vlaneseq
        %v1309 = vshrl.u32 %v1308, 7
        %v1310 = vld [vmem:[%s350] sm:$0x1]
        %v1311 = vlaneseq
        %v1312 = vshrl.u32 %v1311, 7
        %v1313 = vsub.s32 0, %v1312
        %v1314 = vrot.slane %v1310, %v1313
        %vm1315 = vcmp.eq.s32.totalorder %v1309, %v1314
        %v1316 = vsel %vm1315, 1, 0
        %v1317 = vcvt.s32.f32 %v1316
        %v1318 = vld [vmem:[#allocation3] sm:$0xff]
        %1319 = vmatprep.subr.mxu0 0.0
        %1320 = vmatpush1.msra.mxu0 %v1305
        %1321 = vmatprep.subr.mxu0 0.0
        %1322 = vmatpush1.msra.mxu0 %v1302
        %1323 = vmatprep.subr.mxu0 0.0
        %1324 = vmatpush1.msra.mxu0 %v1297
        %1325 = vmatprep.subr.mxu0 0.0
        %1326 = vmatpush1.msra.mxu0 %v1294
        %1327 = vmatprep.subr.mxu0 0.0
        %1328 = vmatpush1.msra.mxu0 %v1289
        %1329 = vmatprep.subr.mxu0 0.0
        %1330 = vmatpush1.msra.mxu0 %v1286
        %1331 = vmatprep.subr.mxu0 0.0
        %1332 = vmatpush1.msra.mxu0 %v1281
        %1333 = vmatprep.subr.mxu0 0.0
        %1334 = vmatpush1.msra.mxu0 %v1278
        %1335 = vmatprep.subr.mxu0 0.0
        %1336 = vmatpush1.msra.mxu0 %v1273
        %1337 = vmatprep.subr.mxu0 0.0
        %1338 = vmatpush1.msra.mxu0 %v1270
        %1339 = vmatprep.subr.mxu0 0.0
        %1340 = vmatpush1.msra.mxu0 %v1265
        %1341 = vmatprep.subr.mxu0 0.0
        %1342 = vmatpush1.msra.mxu0 %v1262
        %1343 = vmatprep.subr.mxu0 0.0
        %1344 = vmatpush1.msra.mxu0 %v1257
        %1345 = vmatprep.subr.mxu0 0.0
        %1346 = vmatpush1.msra.mxu0 %v1254
        %1347 = vmatprep.subr.mxu0 0.0
        %1348 = vmatpush1.msra.mxu0 %v1249
        %1349 = vmatprep.subr.mxu0 0.0
        %1350 = vmatpush1.msra.mxu0 %v1246
        %1351 = vmatprep.subr.mxu0 0.0
        %1352 = vmatpush2.msra.mxu0 0.0
        %1353 = vmatprep.subr.mxu0 0.0
        %1354 = vmatpush2.msra.mxu0 0.0
        %1355 = vmatprep.subr.mxu0 0.0
        %1356 = vmatpush2.msra.mxu0 0.0
        %1357 = vmatprep.subr.mxu0 0.0
        %1358 = vmatpush2.msra.mxu0 0.0
        %1359 = vmatprep.subr.mxu0 0.0
        %1360 = vmatpush2.msra.mxu0 0.0
        %1361 = vmatprep.subr.mxu0 0.0
        %1362 = vmatpush2.msra.mxu0 0.0
        %1363 = vmatprep.subr.mxu0 0.0
        %1364 = vmatpush2.msra.mxu0 0.0
        %1365 = vmatprep.subr.mxu0 0.0
        %1366 = vmatpush2.msra.mxu0 0.0
        %1367 = vmatprep.subr.mxu0 0.0
        %1368 = vmatpush2.msra.mxu0 0.0
        %1369 = vmatprep.subr.mxu0 0.0
        %1370 = vmatpush2.msra.mxu0 0.0
        %1371 = vmatprep.subr.mxu0 0.0
        %1372 = vmatpush2.msra.mxu0 0.0
        %1373 = vmatprep.subr.mxu0 0.0
        %1374 = vmatpush2.msra.mxu0 0.0
        %1375 = vmatprep.subr.mxu0 0.0
        %1376 = vmatpush2.msra.mxu0 0.0
        %1377 = vmatprep.subr.mxu0 0.0
        %1378 = vmatpush2.msra.mxu0 0.0
        %1379 = vmatprep.subr.mxu0 0.0
        %1380 = vmatpush2.msra.mxu0 0.0
        %1381 = vmatprep.subr.mxu0 0.0
        %1382 = vmatpush2.msra.mxu0 0.0
        %1383 = vmatprep.mubr.f32.mxu0 0.0
        %1384 = vmatmul.mubr.f32.gmra.mxu0 %v1317
        %v1385 = vpop.f32.mrf.mxu0
        %v1386 = vadd.f32 0.0, %v1385
        %v1387 = vpop.f32.mrf.mxu0
        %1388 = vdwg.mxu0
        %v1389 = vadd.f32 %v1318, %v1386
        %1390 = vst [vmem:[#allocation3] sm:$0xff] %v1389
        // Predicated region
        $region73: #{gnn_graphpred_forward.1} parent=71 // pred_check
          %p1391 = pneg %p354
        $region74: #{gnn_graphpred_forward.1} parent=71 // pred_check_branch
          %1393 = sbr.rel (%p1391) target = $region76
        $region75: #{gnn_graphpred_forward.1} parent=71 // pred_region
          %v1394 = vld [vmem:[#allocation3] sm:$0xff]
          %v1395 = vld [vmem:[%s3] sm:$0xff]
          %1397 = vset.pattern.permute.xlu0 0
          %1398 = vperm.xlu0 %1397, %v1395
          %v1399 = vpop.permute.xlu0 %1398
          %v1401 = vmul.f32 %v1394, %v1399
          %v1402 = vpack.c.bf16 %v1401, %v1401
          %v1403 = vld [vmem:[%s8] sm:$0xf]
          %v1404 = vld [vmem:[%s8 + $0x4] sm:$0xf]
          %v1405 = vld [vmem:[%s8 + $0x8] sm:$0xf]
          %v1406 = vld [vmem:[%s8 + $0xc] sm:$0xf]
          %v1407 = vld [vmem:[%s8 + $0x10] sm:$0xf]
          %v1408 = vld [vmem:[%s8 + $0x14] sm:$0xf]
          %v1409 = vld [vmem:[%s8 + $0x18] sm:$0xf]
          %v1410 = vld [vmem:[%s8 + $0x1c] sm:$0xf]
          %v1411 = vld [vmem:[%s8 + $0x20] sm:$0xf]
          %v1412 = vld [vmem:[%s8 + $0x24] sm:$0xf]
          %v1413 = vld [vmem:[%s8 + $0x28] sm:$0xf]
          %v1414 = vld [vmem:[%s8 + $0x2c] sm:$0xf]
          %v1415 = vld [vmem:[%s8 + $0x30] sm:$0xf]
          %v1416 = vld [vmem:[%s8 + $0x34] sm:$0xf]
          %v1417 = vld [vmem:[%s8 + $0x38] sm:$0xf]
          %v1418 = vld [vmem:[%s8 + $0x3c] sm:$0xf]
          %v1419 = vld [vmem:[%s9] sm:$0x1]
          %v1421 = vlaneseq
          %v1422 = vshrl.u32 %v1421, 7
          %v1423 = vsub.s32 0, %v1422
          %v1424 = vrot.slane %v1419, %v1423
          %v1442 = vunpack.c.l.b16 %v1403
          %v1443 = vunpack.c.l.b16 %v1404
          %v1444 = vunpack.c.l.b16 %v1405
          %v1445 = vunpack.c.l.b16 %v1406
          %v1446 = vunpack.c.l.b16 %v1407
          %v1447 = vunpack.c.l.b16 %v1408
          %v1448 = vunpack.c.l.b16 %v1409
          %v1449 = vunpack.c.l.b16 %v1410
          %v1450 = vunpack.c.l.b16 %v1411
          %v1451 = vunpack.c.l.b16 %v1412
          %v1452 = vunpack.c.l.b16 %v1413
          %v1453 = vunpack.c.l.b16 %v1414
          %v1454 = vunpack.c.l.b16 %v1415
          %v1455 = vunpack.c.l.b16 %v1416
          %v1456 = vunpack.c.l.b16 %v1417
          %v1457 = vunpack.c.l.b16 %v1418
          %v1458 = vpack.c.b16 %v1443, %v1442
          %v1459 = vpack.c.b16 %v1445, %v1444
          %v1460 = vpack.c.b16 %v1447, %v1446
          %v1461 = vpack.c.b16 %v1449, %v1448
          %v1462 = vpack.c.b16 %v1451, %v1450
          %v1463 = vpack.c.b16 %v1453, %v1452
          %v1464 = vpack.c.b16 %v1455, %v1454
          %v1465 = vpack.c.b16 %v1457, %v1456
          %1474 = vmatprep.subr.bf16.mxu0 0
          %1475 = vmatpush1.bf16.msra.mxu0 %v1465
          %1476 = vmatprep.subr.bf16.mxu0 0
          %1477 = vmatpush1.bf16.msra.mxu0 %v1464
          %1478 = vmatprep.subr.bf16.mxu0 0
          %1479 = vmatpush1.bf16.msra.mxu0 %v1463
          %1480 = vmatprep.subr.bf16.mxu0 0
          %1481 = vmatpush1.bf16.msra.mxu0 %v1462
          %1482 = vmatprep.subr.bf16.mxu0 0
          %1483 = vmatpush1.bf16.msra.mxu0 %v1461
          %1484 = vmatprep.subr.bf16.mxu0 0
          %1485 = vmatpush1.bf16.msra.mxu0 %v1460
          %1486 = vmatprep.subr.bf16.mxu0 0
          %1487 = vmatpush1.bf16.msra.mxu0 %v1459
          %1488 = vmatprep.subr.bf16.mxu0 0
          %1489 = vmatpush1.bf16.msra.mxu0 %v1458
          %1490 = vmatprep.subr.bf16.mxu0 0
          %1491 = vmatpush2.bf16.msra.mxu0 0
          %1492 = vmatprep.subr.bf16.mxu0 0
          %1493 = vmatpush2.bf16.msra.mxu0 0
          %1494 = vmatprep.subr.bf16.mxu0 0
          %1495 = vmatpush2.bf16.msra.mxu0 0
          %1496 = vmatprep.subr.bf16.mxu0 0
          %1497 = vmatpush2.bf16.msra.mxu0 0
          %1498 = vmatprep.subr.bf16.mxu0 0
          %1499 = vmatpush2.bf16.msra.mxu0 0
          %1500 = vmatprep.subr.bf16.mxu0 0
          %1501 = vmatpush2.bf16.msra.mxu0 0
          %1502 = vmatprep.subr.bf16.mxu0 0
          %1503 = vmatpush2.bf16.msra.mxu0 0
          %1504 = vmatprep.subr.bf16.mxu0 0
          %1505 = vmatpush2.bf16.msra.mxu0 0
          %1506 = vmatprep.mubr.bf16.mxu0 0
          %1507 = vmatmul.mubr.bf16.gmra.mxu0 %v1402
          %v1508 = vpop.f32.mrf.mxu0
          %v1509 = vadd.f32 %v1424, %v1508
          %v1510 = vpop.f32.mrf.mxu0
          %v1511 = vpop.f32.mrf.mxu0
          %v1512 = vpop.f32.mrf.mxu0
          %1513 = vdwg.mxu0
          %1514 = vst [vmem:[%s10] sm:$0xff] %v1509
        $region76: #{gnn_graphpred_forward.1} parent=71 // pred_fallthru
          _
      $region72: #{gnn_graphpred_forward.1} parent=59 // pred_fallthru
        _
      // Predicated region
      $region77: #{gnn_graphpred_forward.1} parent=59 // pred_check
        %p1515 = pneg %p261
      $region78: #{gnn_graphpred_forward.1} parent=59 // pred_check_branch
        %1517 = sbr.rel (%p1515) target = $region80
      $region79: #{gnn_graphpred_forward.1} parent=59 // pred_region
        _
      $region80: #{gnn_graphpred_forward.1} parent=59 // pred_fallthru
        _
      // Predicated region
      $region81: #{gnn_graphpred_forward.1} parent=59 // pred_check
        %p1518 = pneg %p261
      $region82: #{gnn_graphpred_forward.1} parent=59 // pred_check_branch
        %1520 = sbr.rel (%p1518) target = $region84
      $region83: #{gnn_graphpred_forward.1} parent=59 // pred_region
        _
      $region84: #{gnn_graphpred_forward.1} parent=59 // pred_fallthru
        _
    $region60: #{gnn_graphpred_forward.1} parent=5 // pred_fallthru
      _
    %p1521 = scmp.le.s32.totalorder 2, %s16
    // Predicated region
    $region85: #{gnn_graphpred_forward.1} parent=5 // pred_check
      %p1522 = pneg %p1521
    $region86: #{gnn_graphpred_forward.1} parent=5 // pred_check_branch
      %1524 = sbr.rel (%p1522) target = $region88
    $region87: #{gnn_graphpred_forward.1} parent=5 // pred_region
      %s1525 = ssub.s32 %s16, 2
    $region88: #{gnn_graphpred_forward.1} parent=5 // pred_fallthru
      _
  $region6: #{gnn_graphpred_forward.1} parent=0 // loop_footer
    %s20 = sadd.s32 1, %s16
  $region7: #{gnn_graphpred_forward.1} parent=0 // loop_footer_branch
    %15 = sbr.rel target = $region3
  $region8: #{gnn_graphpred_forward.1} parent=0 // loop_exit
    _

</llo_original>
